<compile_context>
chip_gen: v6e
topology: v6e:2x2x1
jax: 0.10.0
libtpu: 0.0.40
codegen_flags: <defaults>
</compile_context>

<pallas_src>
import functools

import jax
import jax.numpy as jnp
import numpy as np
from jax import lax
from jax.experimental import pallas as pl
from jax.experimental.pallas import tpu as pltpu


def _round_up(x, m):
    return (x + m - 1) // m * m


def _pick_tile_h(H, target=64):
    """Largest divisor of H <= min(target, H // 2) (gives >= 2 tiles when H > 1)."""
    cap = max(1, min(target, H // 2)) if H > 1 else 1
    for d in range(cap, 0, -1):
        if H % d == 0:
            return d
    return H


def _resblock_kernel(x_ref, w1_ref, b1_ref, w2_ref, b2_ref, cmask_ref,
                     o_ref, mid_ref, *, K, Ht, Wp, c_sub, res_scale):
    """One (image, H-tile) per grid step; everything in flat padded-width frames.

    x_ref    : ((Ht+4P+1)*Wp, C)  halo'd input window (rows flat over padded h,w)
    w*_ref   : (K*K*C, C)         conv weights as an im2col matrix
                                  row = (kh*K + kw)*Cin + cin, col = cout
    b*_ref   : (1, C)             conv bias (f32)
    cmask_ref: (c_sub*Wp, 1)      1.0 on real image columns (< W), 0.0 on h-pad
    o_ref    : (Ht*Wp, C)         output tile, padded-width frame (cols >= W of
                                  each row are don't-care; the wrapper slices)
    mid_ref  : ((Ht+2P+1)*Wp, C)  scratch = zero-padded ReLU(conv1) of this tile
                                  (+P-row halo) = conv2's input frame
    """
    P = K // 2
    C = o_ref.shape[-1]
    h1_sub = Ht + 2 * P            # conv1 output rows (padded-row units), incl. halo

    def conv_chunk(src_ref, base, rows, w_ref, b_ref):
        # 3x3 "same" conv over `rows` flat rows as ONE big MXU matmul:
        # im2col patch built in vregs by concatenating the K*K row-shifted taps.
        taps = []
        for kh in range(K):
            for kw in range(K):
                taps.append(src_ref[pl.ds(base + kh * Wp + kw, rows), :])
        patch = jnp.concatenate(taps, axis=-1)                  # (rows, K*K*C)
        acc = jnp.dot(patch, w_ref[...], preferred_element_type=jnp.float32)
        return acc + b_ref[...].astype(jnp.float32)

    # ---- conv1 + bias + ReLU, written straight into conv2's input frame -----
    # Tiny slivers of `mid` never covered by the h1 store below.
    mid_ref[pl.ds(0, P), :] = jnp.zeros((P, C), mid_ref.dtype)
    tail = P + h1_sub * Wp
    mid_ref[pl.ds(tail, Wp - P), :] = jnp.zeros((Wp - P, C), mid_ref.dtype)

    for s0 in range(0, h1_sub, c_sub):            # static row-chunk loop
        rs = min(c_sub, h1_sub - s0)
        rows = rs * Wp
        h1 = jnp.maximum(conv_chunk(x_ref, s0 * Wp, rows, w1_ref, b1_ref), 0.0)
        # Zero horizontal-pad columns (they double as conv2's left/right zero
        # border).  Precomputed 0/1 mask, no iota % Wp on the VPU.
        h1 = h1 * cmask_ref[pl.ds(0, rows), :]
        mid_ref[pl.ds(P + s0 * Wp, rows), :] = h1.astype(mid_ref.dtype)

    # Boundary tiles: halo rows falling outside the image are conv2's true
    # top/bottom zero padding -> overwrite the conv1 garbage there with zeros.
    t = pl.program_id(1)

    @pl.when(t == 0)
    def _():
        mid_ref[pl.ds(0, P * Wp + P), :] = jnp.zeros((P * Wp + P, C),
                                                     mid_ref.dtype)

    @pl.when(t == pl.num_programs(1) - 1)
    def _():
        off = (Ht + P) * Wp
        mid_ref[pl.ds(off, (P + 1) * Wp), :] = jnp.zeros(((P + 1) * Wp, C),
                                                         mid_ref.dtype)

    # ---- conv2 + bias, scaled residual add -----------------------------------
    x_base = 2 * P * Wp + P        # window offset of this tile's first output pixel
    for s0 in range(0, Ht, c_sub):
        rs = min(c_sub, Ht - s0)
        rows = rs * Wp
        h2 = conv_chunk(mid_ref, s0 * Wp, rows, w2_ref, b2_ref)
        xc = x_ref[pl.ds(x_base + s0 * Wp, rows), :].astype(jnp.float32)
        o_ref[pl.ds(s0 * Wp, rows), :] = (
            xc + jnp.float32(res_scale) * h2).astype(o_ref.dtype)


def resblock_forward(x_nchw, w1, b1, w2, b2, *, res_scale=1.0,
                     mxu_dtype=jnp.float32, out_dtype=None, tile_h=None):
    """x_nchw: (N, C, H, W).  w*: torch layout (Cout, Cin, K, K).  b*: (Cout,).

    mxu_dtype: storage / MXU-input dtype for x, weights and the mid scratch
    (accumulation is always f32).  out_dtype defaults to x's dtype; pass
    jnp.bfloat16 for both in production to halve HBM/VMEM traffic.
    """
    N, C, H, W = x_nchw.shape
    K = w1.shape[-1]
    P = K // 2
    out_dtype = x_nchw.dtype if out_dtype is None else out_dtype

    Ht = _pick_tile_h(H) if tile_h is None else tile_h
    assert H % Ht == 0, "tile_h must divide H"
    T = H // Ht
    Wp = _round_up(W + 2 * P, 8)            # 8-sublane aligned padded width
    win_sub = Ht + 4 * P + 1                # padded rows per halo'd input window
    win_rows = win_sub * Wp
    mid_rows = (Ht + 2 * P + 1) * Wp
    out_rows = Ht * Wp
    c_sub = max(1, min(Ht + 2 * P, max(1, 512 // Wp)))   # row chunk (padded rows)

    # ---- host-side layout plumbing (pad / window / transpose only) ----------
    x_nhwc = jnp.transpose(x_nchw, (0, 2, 3, 1))
    x_pad = jnp.pad(x_nhwc,
                    ((0, 0), (2 * P, 2 * P + 1), (P, Wp - W - P), (0, 0)))
    # Overlapping halo'd H-tiles, materialized once (factor (4P+1)/Ht overhead).
    x_tiles = jnp.stack([x_pad[:, t * Ht:t * Ht + win_sub] for t in range(T)],
                        axis=1)
    x_tiles = x_tiles.reshape(N, T, win_rows, C).astype(mxu_dtype)

    # Weights as im2col matrices: row = (kh*K + kw)*Cin + cin, col = cout.
    w1p = jnp.transpose(w1, (2, 3, 1, 0)).reshape(K * K * C, C).astype(mxu_dtype)
    w2p = jnp.transpose(w2, (2, 3, 1, 0)).reshape(K * K * C, C).astype(mxu_dtype)
    b1r = b1.reshape(1, C).astype(jnp.float32)
    b2r = b2.reshape(1, C).astype(jnp.float32)

    # Precomputed column mask (period Wp; chunks start at multiples of Wp).
    col = np.arange(c_sub * Wp) % Wp
    cmask = jnp.asarray((col < W).astype(np.float32)).reshape(c_sub * Wp, 1)

    # ---- VMEM budget & cost hint ---------------------------------------------
    def nbytes(shape, dt):
        return int(np.prod(shape)) * jnp.dtype(dt).itemsize

    vmem_est = (2 * nbytes((win_rows, C), mxu_dtype)            # input dbl-buffer
                + 2 * nbytes((out_rows, C), out_dtype)          # output dbl-buffer
                + 4 * nbytes((K * K * C, C), mxu_dtype)         # weights
                + 4 * nbytes((1, C), jnp.float32)
                + 2 * nbytes((c_sub * Wp, 1), jnp.float32)
                + nbytes((mid_rows, C), mxu_dtype)              # mid scratch
                + 3 * nbytes((c_sub * Wp, K * K * C), jnp.float32))  # im2col/acc
    vmem_limit = int(min(48 * 1024 * 1024, max(32 * 1024 * 1024, 2 * vmem_est)))

    flops = 2 * 2 * K * K * C * C * H * W * N           # two convs, MAC = 2 flops
    bytes_accessed = (x_tiles.size * x_tiles.dtype.itemsize
                      + N * T * out_rows * C * jnp.dtype(out_dtype).itemsize
                      + 2 * K * K * C * C * jnp.dtype(mxu_dtype).itemsize)
    cost = pl.CostEstimate(flops=int(flops), transcendentals=0,
                           bytes_accessed=int(bytes_accessed))

    kernel = functools.partial(_resblock_kernel, K=K, Ht=Ht, Wp=Wp, c_sub=c_sub,
                               res_scale=float(res_scale))

    out_tiles = pl.pallas_call(
        kernel,
        out_shape=jax.ShapeDtypeStruct((N, T, out_rows, C), out_dtype),
        grid_spec=pltpu.PrefetchScalarGridSpec(
            num_scalar_prefetch=0,
            grid=(N, T),
            in_specs=[
                pl.BlockSpec((pl.Squeezed(), pl.Squeezed(), win_rows, C),
                             lambda n, t: (n, t, 0, 0)),
                pl.BlockSpec((K * K * C, C), lambda n, t: (0, 0)),
                pl.BlockSpec((1, C), lambda n, t: (0, 0)),
                pl.BlockSpec((K * K * C, C), lambda n, t: (0, 0)),
                pl.BlockSpec((1, C), lambda n, t: (0, 0)),
                pl.BlockSpec((c_sub * Wp, 1), lambda n, t: (0, 0)),
            ],
            out_specs=pl.BlockSpec((pl.Squeezed(), pl.Squeezed(), out_rows, C),
                                   lambda n, t: (n, t, 0, 0)),
            scratch_shapes=[pltpu.VMEM((mid_rows, C), mxu_dtype)],
        ),
        compiler_params=pltpu.CompilerParams(
            dimension_semantics=("parallel", "parallel"),
            vmem_limit_bytes=vmem_limit),
        cost_estimate=cost,
    )(x_tiles, w1p, b1r, w2p, b2r, cmask)

    # Drop the padded-width columns and return NCHW (pure layout plumbing).
    out = out_tiles.reshape(N, H, Wp, C)[:, :, :W, :]
    return jnp.transpose(out, (0, 3, 1, 2))


def _reference(x_nchw, w1, b1, w2, b2, res_scale=1.0):
    """Pure-JAX reference (lax conv) matching the PyTorch forward."""
    dn = ("NCHW", "OIHW", "NCHW")
    h = lax.conv_general_dilated(x_nchw, w1, (1, 1), "SAME",
                                 dimension_numbers=dn)
    h = h + b1.reshape(1, -1, 1, 1)
    h = jnp.maximum(h, 0.0)
    h = lax.conv_general_dilated(h, w2, (1, 1), "SAME",
                                 dimension_numbers=dn)
    h = h + b2.reshape(1, -1, 1, 1)
    return h * res_scale + x_nchw


if __name__ == "__main__":
    # Small shapes consistent with ResBlock(conv, n_feats=4, kernel_size=3).
    N, C, H, W = 2, 4, 16, 16
    K = 3
    res_scale = 1.0

    key = jax.random.PRNGKey(0)
    kx, k1, k2, k3, k4 = jax.random.split(key, 5)

    x = jax.random.normal(kx, (N, C, H, W), dtype=jnp.float32)

    fan_in = C * K * K
    scale = 1.0 / np.sqrt(fan_in)
    w1 = jax.random.normal(k1, (C, C, K, K), dtype=jnp.float32) * scale
    b1 = jax.random.normal(k2, (C,), dtype=jnp.float32) * scale
    w2 = jax.random.normal(k3, (C, C, K, K), dtype=jnp.float32) * scale
    b2 = jax.random.normal(k4, (C,), dtype=jnp.float32) * scale

    ref = jax.block_until_ready(_reference(x, w1, b1, w2, b2, res_scale))

    # f32 end-to-end (matches the PyTorch module's numerics); H tiled 2x.
    out = jax.block_until_ready(
        resblock_forward(x, w1, b1, w2, b2, res_scale=res_scale))
    np.testing.assert_allclose(np.asarray(out), np.asarray(ref),
                               rtol=1e-4, atol=1e-5)

    # bf16 storage / MXU inputs / output with f32 accumulation (perf mode).
    out_bf16 = jax.block_until_ready(
        resblock_forward(x, w1, b1, w2, b2, res_scale=res_scale,
                         mxu_dtype=jnp.bfloat16, out_dtype=jnp.bfloat16))
    np.testing.assert_allclose(np.asarray(out_bf16.astype(jnp.float32)),
                               np.asarray(ref), rtol=5e-2, atol=5e-2)

    print("KERNEL_OK")
</pallas_src>

<mosaic_0001>
module attributes {stable_mosaic.version = 11 : i64} {
  func.func @_resblock_kernel(%arg0: i32, %arg1: i32, %arg2: memref<1x1x312x4xf32, #tpu.memory_space<vmem>>, %arg3: memref<36x4xf32, #tpu.memory_space<vmem>>, %arg4: memref<1x4xf32, #tpu.memory_space<vmem>>, %arg5: memref<36x4xf32, #tpu.memory_space<vmem>>, %arg6: memref<1x4xf32, #tpu.memory_space<vmem>>, %arg7: memref<240x1xf32, #tpu.memory_space<vmem>>, %arg8: memref<1x1x192x4xf32, #tpu.memory_space<vmem>>, %arg9: memref<264x4xf32, #tpu.memory_space<vmem>>) attributes {dimension_semantics = [#tpu.dimension_semantics<parallel>, #tpu.dimension_semantics<parallel>], iteration_bounds = array<i64: 2, 2>, scalar_prefetch = 0 : i64, scratch_operands = 1 : i64, tpu.core_type = #tpu.core_type<tc>, window_params = [{transform_indices = @transform_0, window_bounds = array<i64: 1, 1, 312, 4>}, {pipeline_mode = #tpu.pipeline_mode<synchronous>, transform_indices = @transform_1, window_bounds = array<i64: 36, 4>}, {pipeline_mode = #tpu.pipeline_mode<synchronous>, transform_indices = @transform_2, window_bounds = array<i64: 1, 4>}, {pipeline_mode = #tpu.pipeline_mode<synchronous>, transform_indices = @transform_3, window_bounds = array<i64: 36, 4>}, {pipeline_mode = #tpu.pipeline_mode<synchronous>, transform_indices = @transform_4, window_bounds = array<i64: 1, 4>}, {pipeline_mode = #tpu.pipeline_mode<synchronous>, transform_indices = @transform_5, window_bounds = array<i64: 240, 1>}, {transform_indices = @transform_6, window_bounds = array<i64: 1, 1, 192, 4>}]} {
    %cst = arith.constant 0.000000e+00 : f32
    %0 = vector.broadcast %cst : f32 to vector<1x4xf32>
    %c0 = arith.constant 0 : index
    %c0_0 = arith.constant 0 : index
    %1 = vector.load %arg9[%c0, %c0_0] : memref<264x4xf32, #tpu.memory_space<vmem>>, vector<1x4xf32>
    tpu.vector_store %arg9[%c0, %c0_0], %0 {strides = array<i32>} : memref<264x4xf32, #tpu.memory_space<vmem>>, vector<1x4xf32>,
    %cst_1 = arith.constant 0.000000e+00 : f32
    %2 = vector.broadcast %cst_1 : f32 to vector<23x4xf32>
    %c241 = arith.constant 241 : index
    %c0_2 = arith.constant 0 : index
    %3 = vector.load %arg9[%c241, %c0_2] : memref<264x4xf32, #tpu.memory_space<vmem>>, vector<23x4xf32>
    tpu.vector_store %arg9[%c241, %c0_2], %2 {strides = array<i32>} : memref<264x4xf32, #tpu.memory_space<vmem>>, vector<23x4xf32>,
    %c0_3 = arith.constant 0 : index
    %c0_4 = arith.constant 0 : index
    %c0_5 = arith.constant 0 : index
    %c0_6 = arith.constant 0 : index
    %4 = vector.load %arg2[%c0_3, %c0_4, %c0_5, %c0_6] : memref<1x1x312x4xf32, #tpu.memory_space<vmem>>, vector<1x1x240x4xf32>
    %5 = vector.shape_cast %4 : vector<1x1x240x4xf32> to vector<240x4xf32>
    %c0_7 = arith.constant 0 : index
    %c0_8 = arith.constant 0 : index
    %c1 = arith.constant 1 : index
    %c0_9 = arith.constant 0 : index
    %6 = vector.load %arg2[%c0_7, %c0_8, %c1, %c0_9] : memref<1x1x312x4xf32, #tpu.memory_space<vmem>>, vector<1x1x240x4xf32>
    %7 = vector.shape_cast %6 : vector<1x1x240x4xf32> to vector<240x4xf32>
    %c0_10 = arith.constant 0 : index
    %c0_11 = arith.constant 0 : index
    %c2 = arith.constant 2 : index
    %c0_12 = arith.constant 0 : index
    %8 = vector.load %arg2[%c0_10, %c0_11, %c2, %c0_12] : memref<1x1x312x4xf32, #tpu.memory_space<vmem>>, vector<1x1x240x4xf32>
    %9 = vector.shape_cast %8 : vector<1x1x240x4xf32> to vector<240x4xf32>
    %c0_13 = arith.constant 0 : index
    %c0_14 = arith.constant 0 : index
    %c24 = arith.constant 24 : index
    %c0_15 = arith.constant 0 : index
    %10 = vector.load %arg2[%c0_13, %c0_14, %c24, %c0_15] : memref<1x1x312x4xf32, #tpu.memory_space<vmem>>, vector<1x1x240x4xf32>
    %11 = vector.shape_cast %10 : vector<1x1x240x4xf32> to vector<240x4xf32>
    %c0_16 = arith.constant 0 : index
    %c0_17 = arith.constant 0 : index
    %c25 = arith.constant 25 : index
    %c0_18 = arith.constant 0 : index
    %12 = vector.load %arg2[%c0_16, %c0_17, %c25, %c0_18] : memref<1x1x312x4xf32, #tpu.memory_space<vmem>>, vector<1x1x240x4xf32>
    %13 = vector.shape_cast %12 : vector<1x1x240x4xf32> to vector<240x4xf32>
    %c0_19 = arith.constant 0 : index
    %c0_20 = arith.constant 0 : index
    %c26 = arith.constant 26 : index
    %c0_21 = arith.constant 0 : index
    %14 = vector.load %arg2[%c0_19, %c0_20, %c26, %c0_21] : memref<1x1x312x4xf32, #tpu.memory_space<vmem>>, vector<1x1x240x4xf32>
    %15 = vector.shape_cast %14 : vector<1x1x240x4xf32> to vector<240x4xf32>
    %c0_22 = arith.constant 0 : index
    %c0_23 = arith.constant 0 : index
    %c48 = arith.constant 48 : index
    %c0_24 = arith.constant 0 : index
    %16 = vector.load %arg2[%c0_22, %c0_23, %c48, %c0_24] : memref<1x1x312x4xf32, #tpu.memory_space<vmem>>, vector<1x1x240x4xf32>
    %17 = vector.shape_cast %16 : vector<1x1x240x4xf32> to vector<240x4xf32>
    %c0_25 = arith.constant 0 : index
    %c0_26 = arith.constant 0 : index
    %c49 = arith.constant 49 : index
    %c0_27 = arith.constant 0 : index
    %18 = vector.load %arg2[%c0_25, %c0_26, %c49, %c0_27] : memref<1x1x312x4xf32, #tpu.memory_space<vmem>>, vector<1x1x240x4xf32>
    %19 = vector.shape_cast %18 : vector<1x1x240x4xf32> to vector<240x4xf32>
    %c0_28 = arith.constant 0 : index
    %c0_29 = arith.constant 0 : index
    %c50 = arith.constant 50 : index
    %c0_30 = arith.constant 0 : index
    %20 = vector.load %arg2[%c0_28, %c0_29, %c50, %c0_30] : memref<1x1x312x4xf32, #tpu.memory_space<vmem>>, vector<1x1x240x4xf32>
    %21 = vector.shape_cast %20 : vector<1x1x240x4xf32> to vector<240x4xf32>
    %22 = tpu.concatenate %5, %7, %9, %11, %13, %15, %17, %19, %21 in 1 : vector<240x4xf32>, vector<240x4xf32>, vector<240x4xf32>, vector<240x4xf32>, vector<240x4xf32>, vector<240x4xf32>, vector<240x4xf32>, vector<240x4xf32>, vector<240x4xf32> -> vector<240x36xf32>
    %c0_31 = arith.constant 0 : index
    %c0_32 = arith.constant 0 : index
    %23 = vector.load %arg3[%c0_31, %c0_32] : memref<36x4xf32, #tpu.memory_space<vmem>>, vector<36x4xf32>
    %cst_33 = arith.constant dense<0.000000e+00> : vector<240x4xf32>
    %24 = tpu.matmul %22, %23, %cst_33 {dimension_numbers = #tpu.dot_dimension_numbers<[1], [0], [0], [1], [0, 0, 1, 1], [], []>} : vector<240x36xf32>, vector<36x4xf32>, vector<240x4xf32> -> vector<240x4xf32>
    %c0_34 = arith.constant 0 : index
    %c0_35 = arith.constant 0 : index
    %25 = vector.load %arg4[%c0_34, %c0_35] : memref<1x4xf32, #tpu.memory_space<vmem>>, vector<1x4xf32>
    %26 = vector.broadcast %25 : vector<1x4xf32> to vector<240x4xf32>
    %27 = arith.addf %24, %26 : vector<240x4xf32>
    %cst_36 = arith.constant 0.000000e+00 : f32
    %28 = vector.broadcast %cst_36 : f32 to vector<240x4xf32>
    %29 = arith.maximumf %27, %28 : vector<240x4xf32>
    %c0_37 = arith.constant 0 : index
    %c0_38 = arith.constant 0 : index
    %30 = vector.load %arg7[%c0_37, %c0_38] : memref<240x1xf32, #tpu.memory_space<vmem>>, vector<240x1xf32>
    %31 = vector.broadcast %30 : vector<240x1xf32> to vector<240x4xf32>
    %32 = arith.mulf %29, %31 : vector<240x4xf32>
    %c1_39 = arith.constant 1 : index
    %c0_40 = arith.constant 0 : index
    %33 = vector.load %arg9[%c1_39, %c0_40] : memref<264x4xf32, #tpu.memory_space<vmem>>, vector<240x4xf32>
    tpu.vector_store %arg9[%c1_39, %c0_40], %32 {strides = array<i32>} : memref<264x4xf32, #tpu.memory_space<vmem>>, vector<240x4xf32>,
    %c0_i32 = arith.constant 0 : i32
    %34 = arith.cmpi eq, %arg1, %c0_i32 : i32
    %35 = arith.extui %34 : i1 to i32
    %c0_i32_41 = arith.constant 0 : i32
    %36 = arith.cmpi ne, %35, %c0_i32_41 : i32
    scf.if %36 {
      %cst_75 = arith.constant 0.000000e+00 : f32
      %63 = vector.broadcast %cst_75 : f32 to vector<25x4xf32>
      %c0_76 = arith.constant 0 : index
      %c0_77 = arith.constant 0 : index
      %64 = vector.load %arg9[%c0_76, %c0_77] : memref<264x4xf32, #tpu.memory_space<vmem>>, vector<25x4xf32>
      tpu.vector_store %arg9[%c0_76, %c0_77], %63 {strides = array<i32>} : memref<264x4xf32, #tpu.memory_space<vmem>>, vector<25x4xf32>,
    } else {
    }
    %c1_i32 = arith.constant 1 : i32
    %37 = arith.cmpi eq, %arg1, %c1_i32 : i32
    %38 = arith.extui %37 : i1 to i32
    %c0_i32_42 = arith.constant 0 : i32
    %39 = arith.cmpi ne, %38, %c0_i32_42 : i32
    scf.if %39 {
      %cst_75 = arith.constant 0.000000e+00 : f32
      %63 = vector.broadcast %cst_75 : f32 to vector<48x4xf32>
      %c216 = arith.constant 216 : index
      %c0_76 = arith.constant 0 : index
      %64 = vector.load %arg9[%c216, %c0_76] : memref<264x4xf32, #tpu.memory_space<vmem>>, vector<48x4xf32>
      tpu.vector_store %arg9[%c216, %c0_76], %63 {strides = array<i32>} : memref<264x4xf32, #tpu.memory_space<vmem>>, vector<48x4xf32>,
    } else {
    }
    %c0_43 = arith.constant 0 : index
    %c0_44 = arith.constant 0 : index
    %40 = vector.load %arg9[%c0_43, %c0_44] : memref<264x4xf32, #tpu.memory_space<vmem>>, vector<192x4xf32>
    %c1_45 = arith.constant 1 : index
    %c0_46 = arith.constant 0 : index
    %41 = vector.load %arg9[%c1_45, %c0_46] : memref<264x4xf32, #tpu.memory_space<vmem>>, vector<192x4xf32>
    %c2_47 = arith.constant 2 : index
    %c0_48 = arith.constant 0 : index
    %42 = vector.load %arg9[%c2_47, %c0_48] : memref<264x4xf32, #tpu.memory_space<vmem>>, vector<192x4xf32>
    %c24_49 = arith.constant 24 : index
    %c0_50 = arith.constant 0 : index
    %43 = vector.load %arg9[%c24_49, %c0_50] : memref<264x4xf32, #tpu.memory_space<vmem>>, vector<192x4xf32>
    %c25_51 = arith.constant 25 : index
    %c0_52 = arith.constant 0 : index
    %44 = vector.load %arg9[%c25_51, %c0_52] : memref<264x4xf32, #tpu.memory_space<vmem>>, vector<192x4xf32>
    %c26_53 = arith.constant 26 : index
    %c0_54 = arith.constant 0 : index
    %45 = vector.load %arg9[%c26_53, %c0_54] : memref<264x4xf32, #tpu.memory_space<vmem>>, vector<192x4xf32>
    %c48_55 = arith.constant 48 : index
    %c0_56 = arith.constant 0 : index
    %46 = vector.load %arg9[%c48_55, %c0_56] : memref<264x4xf32, #tpu.memory_space<vmem>>, vector<192x4xf32>
    %c49_57 = arith.constant 49 : index
    %c0_58 = arith.constant 0 : index
    %47 = vector.load %arg9[%c49_57, %c0_58] : memref<264x4xf32, #tpu.memory_space<vmem>>, vector<192x4xf32>
    %c50_59 = arith.constant 50 : index
    %c0_60 = arith.constant 0 : index
    %48 = vector.load %arg9[%c50_59, %c0_60] : memref<264x4xf32, #tpu.memory_space<vmem>>, vector<192x4xf32>
    %49 = tpu.concatenate %40, %41, %42, %43, %44, %45, %46, %47, %48 in 1 : vector<192x4xf32>, vector<192x4xf32>, vector<192x4xf32>, vector<192x4xf32>, vector<192x4xf32>, vector<192x4xf32>, vector<192x4xf32>, vector<192x4xf32>, vector<192x4xf32> -> vector<192x36xf32>
    %c0_61 = arith.constant 0 : index
    %c0_62 = arith.constant 0 : index
    %50 = vector.load %arg5[%c0_61, %c0_62] : memref<36x4xf32, #tpu.memory_space<vmem>>, vector<36x4xf32>
    %cst_63 = arith.constant dense<0.000000e+00> : vector<192x4xf32>
    %51 = tpu.matmul %49, %50, %cst_63 {dimension_numbers = #tpu.dot_dimension_numbers<[1], [0], [0], [1], [0, 0, 1, 1], [], []>} : vector<192x36xf32>, vector<36x4xf32>, vector<192x4xf32> -> vector<192x4xf32>
    %c0_64 = arith.constant 0 : index
    %c0_65 = arith.constant 0 : index
    %52 = vector.load %arg6[%c0_64, %c0_65] : memref<1x4xf32, #tpu.memory_space<vmem>>, vector<1x4xf32>
    %53 = vector.broadcast %52 : vector<1x4xf32> to vector<192x4xf32>
    %54 = arith.addf %51, %53 : vector<192x4xf32>
    %c0_66 = arith.constant 0 : index
    %c0_67 = arith.constant 0 : index
    %c49_68 = arith.constant 49 : index
    %c0_69 = arith.constant 0 : index
    %55 = vector.load %arg2[%c0_66, %c0_67, %c49_68, %c0_69] : memref<1x1x312x4xf32, #tpu.memory_space<vmem>>, vector<1x1x192x4xf32>
    %56 = vector.shape_cast %55 : vector<1x1x192x4xf32> to vector<192x4xf32>
    %cst_70 = arith.constant 1.000000e+00 : f32
    %57 = vector.broadcast %cst_70 : f32 to vector<192x4xf32>
    %58 = arith.mulf %57, %54 : vector<192x4xf32>
    %59 = arith.addf %56, %58 : vector<192x4xf32>
    %c0_71 = arith.constant 0 : index
    %c0_72 = arith.constant 0 : index
    %c0_73 = arith.constant 0 : index
    %c0_74 = arith.constant 0 : index
    %60 = vector.load %arg8[%c0_71, %c0_72, %c0_73, %c0_74] : memref<1x1x192x4xf32, #tpu.memory_space<vmem>>, vector<1x1x192x4xf32>
    %61 = vector.shape_cast %60 : vector<1x1x192x4xf32> to vector<192x4xf32>
    %62 = vector.shape_cast %59 : vector<192x4xf32> to vector<1x1x192x4xf32>
    tpu.vector_store %arg8[%c0_71, %c0_72, %c0_73, %c0_74], %62 {strides = array<i32>} : memref<1x1x192x4xf32, #tpu.memory_space<vmem>>, vector<1x1x192x4xf32>,
    return
  }
  func.func @transform_0(%arg0: i32, %arg1: i32) -> (i32, i32, i32, i32) {
    %c0_i32 = arith.constant 0 : i32
    %c0_i32_0 = arith.constant 0 : i32
    %c0_i32_1 = arith.constant 0 : i32
    return %arg0, %arg1, %c0_i32, %c0_i32_0 : i32, i32, i32, i32
  }
  func.func @transform_1(%arg0: i32, %arg1: i32) -> (i32, i32) {
    %c0_i32 = arith.constant 0 : i32
    %c0_i32_0 = arith.constant 0 : i32
    %c0_i32_1 = arith.constant 0 : i32
    return %c0_i32, %c0_i32_0 : i32, i32
  }
  func.func @transform_2(%arg0: i32, %arg1: i32) -> (i32, i32) {
    %c0_i32 = arith.constant 0 : i32
    %c0_i32_0 = arith.constant 0 : i32
    %c0_i32_1 = arith.constant 0 : i32
    return %c0_i32, %c0_i32_0 : i32, i32
  }
  func.func @transform_3(%arg0: i32, %arg1: i32) -> (i32, i32) {
    %c0_i32 = arith.constant 0 : i32
    %c0_i32_0 = arith.constant 0 : i32
    %c0_i32_1 = arith.constant 0 : i32
    return %c0_i32, %c0_i32_0 : i32, i32
  }
  func.func @transform_4(%arg0: i32, %arg1: i32) -> (i32, i32) {
    %c0_i32 = arith.constant 0 : i32
    %c0_i32_0 = arith.constant 0 : i32
    %c0_i32_1 = arith.constant 0 : i32
    return %c0_i32, %c0_i32_0 : i32, i32
  }
  func.func @transform_5(%arg0: i32, %arg1: i32) -> (i32, i32) {
    %c0_i32 = arith.constant 0 : i32
    %c0_i32_0 = arith.constant 0 : i32
    %c0_i32_1 = arith.constant 0 : i32
    return %c0_i32, %c0_i32_0 : i32, i32
  }
  func.func @transform_6(%arg0: i32, %arg1: i32) -> (i32, i32, i32, i32) {
    %c0_i32 = arith.constant 0 : i32
    %c0_i32_0 = arith.constant 0 : i32
    %c0_i32_1 = arith.constant 0 : i32
    return %arg0, %arg1, %c0_i32, %c0_i32_0 : i32, i32, i32, i32
  }
}

</mosaic_0001>

<llo_original>
// kernel: tpu_custom_call.1
$region0: #{tpu_custom_call.1}
  #allocation0 [shape = 'u32[]', space=smem, size = 0x4, offset = 0x4, fixed_abs, tag = 'smem constant byte address 0x4 - core index']
  #allocation1 [shape = 'u32[144,128]{1,0:T(1,128)}', space=vmem, size = 0x12000, scoped, tag = 'internal scratch']
  #allocation2 [shape = 'f32[264,4]{1,0:T(8,128)}', space=vmem, size = 0x21000, scoped, tag = 'scratch operand']
  %s0 = inlined_call_operand.vmem [shape: f32[2,2,312,4], index: 0, kind: input, shape index: {}]
  %s1 = inlined_call_operand.vmem [shape: f32[36,4], index: 1, kind: input, shape index: {}]
  %s2 = inlined_call_operand.vmem [shape: f32[1,4], index: 2, kind: input, shape index: {}]
  %s3 = inlined_call_operand.vmem [shape: f32[36,4], index: 3, kind: input, shape index: {}]
  %s4 = inlined_call_operand.vmem [shape: f32[1,4], index: 4, kind: input, shape index: {}]
  %s5 = inlined_call_operand.vmem [shape: f32[240,1], index: 5, kind: input, shape index: {}]
  %s6 = inlined_call_operand.vmem [shape: f32[2,2,192,4], index: 6, kind: output, shape index: {}]
  %s7 = sld [smem:[#allocation0]]
  $region65: #{tpu_custom_call.1} parent=0
    _
  %s9 = ssub.s32 1, %s7
  %s10 = scalar_select 0, %s9, %s7
  loop: start=0, step=1, limit=6
  $region2: #{tpu_custom_call.1} parent=0 // loop_pre_header
    _
  $region3: #{tpu_custom_call.1} parent=0 // loop_header
    %s12 = sphi 0, %s16
    %p13 = scmp.ge.s32.totalorder %s12, 6
    %s19 = sphi 0, %s31
    %s20 = sphi 0, %s27
    %s21 = sphi 0, %s19
    %s22 = sphi 0, %s20
    %s23 = sphi 0, %s21
    %s24 = sphi 0, %s22
    %s36 = sphi 0, %s38
    %s39 = sphi 0, %s36
    %s40 = sphi 0, %s39
    %s56 = sphi 0, %s40
    %s60 = sphi 0, %s60
    %s62 = sphi 0, %s60
    %s63 = sphi 0, %s62
    %s77 = sphi 0, %s63
    %s81 = sphi 0, %s81
    %s83 = sphi 0, %s81
    %s84 = sphi 0, %s83
    %s98 = sphi 0, %s84
    %s102 = sphi 0, %s102
    %s104 = sphi 0, %s102
    %s105 = sphi 0, %s104
    %s119 = sphi 0, %s105
    %s123 = sphi 0, %s123
    %s125 = sphi 0, %s123
    %s126 = sphi 0, %s125
    %s140 = sphi 0, %s126
    %s144 = sphi 0, %s144
    %s146 = sphi 0, %s144
    %s147 = sphi 0, %s146
    %s161 = sphi 0, %s147
    %s169 = sphi 0, %s171
    %s172 = sphi 0, %s169
    %s173 = sphi 0, %s172
    %s189 = sphi 0, %s173
  $region4: #{tpu_custom_call.1} parent=0 // loop_header_branch
    %15 = sbr.rel (%p13) target = $region8
  $region5: #{tpu_custom_call.1} parent=0 // loop_body
    %s17 = ssub.s32 %s12, 1
    %s18 = ssub.s32 %s12, 2
    %s25 = sadd.s32 1, %s20
    %p26 = scmp.ge.s32.totalorder %s25, 2
    %s27 = scalar_select %p26, 0, %s25
    %s28 = sadd.s32 1, %s19
    %s29 = scalar_select %p26, %s28, %s19
    %p30 = scmp.ge.s32.totalorder %s29, 2
    %s31 = scalar_select %p30, 0, %s29
    %s32 = ssub.s32 %s19, %s31
    %s33 = ssub.s32 %s20, %s27
    %s34 = sor.u32 %s32, %s33
    %p35 = scmp.eq.s32.totalorder %s34, 0
    %s37 = sadd.s32 %s36, 1
    %s38 = scalar_select %p35, %s36, %s37
    %p41 = pneg %p35
    %p42 = scmp.eq.s32.totalorder %s12, 3
    %p43 = por %p41, %p42
    %p44 = scmp.ne.s32.totalorder %s36, %s39
    %p45 = scmp.eq.s32.totalorder %s12, 0
    %p46 = por %p44, %p45
    %p47 = scmp.ne.s32.totalorder %s36, %s39
    %p48 = scmp.eq.s32.totalorder %s17, 3
    %p49 = por %p47, %p48
    %p50 = scmp.ne.s32.totalorder %s39, %s40
    %p51 = scmp.eq.s32.totalorder %s17, 0
    %p52 = por %p50, %p51
    %p53 = scmp.ne.s32.totalorder %s39, %s40
    %p54 = scmp.eq.s32.totalorder %s18, 3
    %p55 = por %p53, %p54
    %p57 = scmp.ne.s32.totalorder %s40, %s56
    %p58 = scmp.eq.s32.totalorder %s18, 0
    %p59 = por %p57, %p58
    %s61 = sadd.s32 %s60, 1
    %p64 = scmp.eq.s32.totalorder %s12, 3
    %p65 = scmp.ne.s32.totalorder %s60, %s62
    %p66 = scmp.eq.s32.totalorder %s12, 0
    %p67 = por %p65, %p66
    %p68 = scmp.ne.s32.totalorder %s60, %s62
    %p69 = scmp.eq.s32.totalorder %s17, 3
    %p70 = por %p68, %p69
    %p71 = scmp.ne.s32.totalorder %s62, %s63
    %p72 = scmp.eq.s32.totalorder %s17, 0
    %p73 = por %p71, %p72
    %p74 = scmp.ne.s32.totalorder %s62, %s63
    %p75 = scmp.eq.s32.totalorder %s18, 3
    %p76 = por %p74, %p75
    %p78 = scmp.ne.s32.totalorder %s63, %s77
    %p79 = scmp.eq.s32.totalorder %s18, 0
    %p80 = por %p78, %p79
    %s82 = sadd.s32 %s81, 1
    %p85 = scmp.eq.s32.totalorder %s12, 3
    %p86 = scmp.ne.s32.totalorder %s81, %s83
    %p87 = scmp.eq.s32.totalorder %s12, 0
    %p88 = por %p86, %p87
    %p89 = scmp.ne.s32.totalorder %s81, %s83
    %p90 = scmp.eq.s32.totalorder %s17, 3
    %p91 = por %p89, %p90
    %p92 = scmp.ne.s32.totalorder %s83, %s84
    %p93 = scmp.eq.s32.totalorder %s17, 0
    %p94 = por %p92, %p93
    %p95 = scmp.ne.s32.totalorder %s83, %s84
    %p96 = scmp.eq.s32.totalorder %s18, 3
    %p97 = por %p95, %p96
    %p99 = scmp.ne.s32.totalorder %s84, %s98
    %p100 = scmp.eq.s32.totalorder %s18, 0
    %p101 = por %p99, %p100
    %s103 = sadd.s32 %s102, 1
    %p106 = scmp.eq.s32.totalorder %s12, 3
    %p107 = scmp.ne.s32.totalorder %s102, %s104
    %p108 = scmp.eq.s32.totalorder %s12, 0
    %p109 = por %p107, %p108
    %p110 = scmp.ne.s32.totalorder %s102, %s104
    %p111 = scmp.eq.s32.totalorder %s17, 3
    %p112 = por %p110, %p111
    %p113 = scmp.ne.s32.totalorder %s104, %s105
    %p114 = scmp.eq.s32.totalorder %s17, 0
    %p115 = por %p113, %p114
    %p116 = scmp.ne.s32.totalorder %s104, %s105
    %p117 = scmp.eq.s32.totalorder %s18, 3
    %p118 = por %p116, %p117
    %p120 = scmp.ne.s32.totalorder %s105, %s119
    %p121 = scmp.eq.s32.totalorder %s18, 0
    %p122 = por %p120, %p121
    %s124 = sadd.s32 %s123, 1
    %p127 = scmp.eq.s32.totalorder %s12, 3
    %p128 = scmp.ne.s32.totalorder %s123, %s125
    %p129 = scmp.eq.s32.totalorder %s12, 0
    %p130 = por %p128, %p129
    %p131 = scmp.ne.s32.totalorder %s123, %s125
    %p132 = scmp.eq.s32.totalorder %s17, 3
    %p133 = por %p131, %p132
    %p134 = scmp.ne.s32.totalorder %s125, %s126
    %p135 = scmp.eq.s32.totalorder %s17, 0
    %p136 = por %p134, %p135
    %p137 = scmp.ne.s32.totalorder %s125, %s126
    %p138 = scmp.eq.s32.totalorder %s18, 3
    %p139 = por %p137, %p138
    %p141 = scmp.ne.s32.totalorder %s126, %s140
    %p142 = scmp.eq.s32.totalorder %s18, 0
    %p143 = por %p141, %p142
    %s145 = sadd.s32 %s144, 1
    %p148 = scmp.eq.s32.totalorder %s12, 3
    %p149 = scmp.ne.s32.totalorder %s144, %s146
    %p150 = scmp.eq.s32.totalorder %s12, 0
    %p151 = por %p149, %p150
    %p152 = scmp.ne.s32.totalorder %s144, %s146
    %p153 = scmp.eq.s32.totalorder %s17, 3
    %p154 = por %p152, %p153
    %p155 = scmp.ne.s32.totalorder %s146, %s147
    %p156 = scmp.eq.s32.totalorder %s17, 0
    %p157 = por %p155, %p156
    %p158 = scmp.ne.s32.totalorder %s146, %s147
    %p159 = scmp.eq.s32.totalorder %s18, 3
    %p160 = por %p158, %p159
    %p162 = scmp.ne.s32.totalorder %s147, %s161
    %p163 = scmp.eq.s32.totalorder %s18, 0
    %p164 = por %p162, %p163
    %s165 = ssub.s32 %s19, %s31
    %s166 = ssub.s32 %s20, %s27
    %s167 = sor.u32 %s165, %s166
    %p168 = scmp.eq.s32.totalorder %s167, 0
    %s170 = sadd.s32 %s169, 1
    %s171 = scalar_select %p168, %s169, %s170
    %p174 = pneg %p168
    %p175 = scmp.eq.s32.totalorder %s12, 3
    %p176 = por %p174, %p175
    %p177 = scmp.ne.s32.totalorder %s169, %s172
    %p178 = scmp.eq.s32.totalorder %s12, 0
    %p179 = por %p177, %p178
    %p180 = scmp.ne.s32.totalorder %s169, %s172
    %p181 = scmp.eq.s32.totalorder %s17, 3
    %p182 = por %p180, %p181
    %p183 = scmp.ne.s32.totalorder %s172, %s173
    %p184 = scmp.eq.s32.totalorder %s17, 0
    %p185 = por %p183, %p184
    %p186 = scmp.ne.s32.totalorder %s172, %s173
    %p187 = scmp.eq.s32.totalorder %s18, 3
    %p188 = por %p186, %p187
    %p190 = scmp.ne.s32.totalorder %s173, %s189
    %p191 = scmp.eq.s32.totalorder %s18, 0
    %p192 = por %p190, %p191
    %p193 = scmp.le.s32.totalorder 1, %s12
    %p194 = scmp.lt.s32.totalorder %s12, 5
    %p195 = pnand %p193, %p194
    %p196 = pneg %p195
    // Predicated region
    $region9: #{tpu_custom_call.1} parent=5 // pred_check
      _
    $region10: #{tpu_custom_call.1} parent=5 // pred_check_branch
      %198 = sbr.rel (%p195) target = $region12
    $region11: #{tpu_custom_call.1} parent=5 // pred_region
      %s199 = ssub.s32 %s12, 1
      // Predicated region
      $region13: #{tpu_custom_call.1} parent=11 // pred_check
        %p200 = pneg %p73
      $region14: #{tpu_custom_call.1} parent=11 // pred_check_branch
        %202 = sbr.rel (%p200) target = $region16
      $region15: #{tpu_custom_call.1} parent=11 // pred_region
        _
      $region16: #{tpu_custom_call.1} parent=11 // pred_fallthru
        _
      // Predicated region
      $region17: #{tpu_custom_call.1} parent=11 // pred_check
        %p203 = pneg %p94
      $region18: #{tpu_custom_call.1} parent=11 // pred_check_branch
        %205 = sbr.rel (%p203) target = $region20
      $region19: #{tpu_custom_call.1} parent=11 // pred_region
        _
      $region20: #{tpu_custom_call.1} parent=11 // pred_fallthru
        _
      // Predicated region
      $region21: #{tpu_custom_call.1} parent=11 // pred_check
        %p206 = pneg %p115
      $region22: #{tpu_custom_call.1} parent=11 // pred_check_branch
        %208 = sbr.rel (%p206) target = $region24
      $region23: #{tpu_custom_call.1} parent=11 // pred_region
        _
      $region24: #{tpu_custom_call.1} parent=11 // pred_fallthru
        _
      // Predicated region
      $region25: #{tpu_custom_call.1} parent=11 // pred_check
        %p209 = pneg %p136
      $region26: #{tpu_custom_call.1} parent=11 // pred_check_branch
        %211 = sbr.rel (%p209) target = $region28
      $region27: #{tpu_custom_call.1} parent=11 // pred_region
        _
      $region28: #{tpu_custom_call.1} parent=11 // pred_fallthru
        _
      // Predicated region
      $region29: #{tpu_custom_call.1} parent=11 // pred_check
        %p212 = pneg %p157
      $region30: #{tpu_custom_call.1} parent=11 // pred_check_branch
        %214 = sbr.rel (%p212) target = $region32
      $region31: #{tpu_custom_call.1} parent=11 // pred_region
        _
      $region32: #{tpu_custom_call.1} parent=11 // pred_fallthru
        _
    $region12: #{tpu_custom_call.1} parent=5 // pred_fallthru
      _
    %p215 = scmp.lt.s32.totalorder %s12, 4
    // Predicated region
    $region33: #{tpu_custom_call.1} parent=5 // pred_check
      %p216 = pneg %p215
    $region34: #{tpu_custom_call.1} parent=5 // pred_check_branch
      %218 = sbr.rel (%p216) target = $region36
    $region35: #{tpu_custom_call.1} parent=5 // pred_region
      // Predicated region
      $region37: #{tpu_custom_call.1} parent=35 // pred_check
        %p219 = pneg %p46
      $region38: #{tpu_custom_call.1} parent=35 // pred_check_branch
        %221 = sbr.rel (%p219) target = $region40
      $region39: #{tpu_custom_call.1} parent=35 // pred_region
        %p222 = scmp.lt.s32.totalorder %s19, 1
        %s223 = scalar_select %p222, %s19, 1
        %p224 = scmp.lt.s32.totalorder %s20, 1
        %s225 = scalar_select %p224, %s20, 1
        %s226 = smul.addr %s225, 39
        %s227 = smul.addr %s223, 78
        %s228 = sadd.s32 %s226, %s227
        %s229 = smul.addr %s228, 8
        %s230 = scalar_lea.vmem %s0, %s229
      $region40: #{tpu_custom_call.1} parent=35 // pred_fallthru
        _
    $region36: #{tpu_custom_call.1} parent=5 // pred_fallthru
      _
    %p231 = scmp.le.s32.totalorder 1, %s12
    %p232 = scmp.lt.s32.totalorder %s12, 5
    %p233 = pnand %p231, %p232
    %p234 = pneg %p233
    // Predicated region
    $region41: #{tpu_custom_call.1} parent=5 // pred_check
      _
    $region42: #{tpu_custom_call.1} parent=5 // pred_check_branch
      %236 = sbr.rel (%p233) target = $region44
    $region43: #{tpu_custom_call.1} parent=5 // pred_region
      %s237 = ssub.s32 %s12, 1
      %p238 = scmp.lt.s32.totalorder %s21, 1
      %s239 = scalar_select %p238, %s21, 1
      %p240 = scmp.lt.s32.totalorder %s22, 1
      %s241 = scalar_select %p240, %s22, 1
      %s242 = smul.addr %s241, 39
      %s243 = smul.addr %s239, 78
      %s244 = sadd.s32 %s242, %s243
      %s245 = smul.addr %s244, 8
      %s246 = scalar_lea.vmem %s0, %s245
      %p247 = pneg %p52
      %p248 = pneg %p49
      %p249 = pneg %p73
      %p250 = pneg %p70
      %p251 = pneg %p94
      %p252 = pneg %p91
      %p253 = pneg %p115
      %p254 = pneg %p112
      %p255 = pneg %p136
      %p256 = pneg %p133
      %p257 = pneg %p157
      %p258 = pneg %p154
      %p259 = pneg %p185
      %p260 = pneg %p182
      %p261 = scmp.lt.s32.totalorder %s21, 1
      %s262 = scalar_select %p261, %s21, 1
      %p263 = scmp.lt.s32.totalorder %s22, 1
      %s264 = scalar_select %p263, %s22, 1
      %s265 = smul.addr %s264, 24
      %s266 = smul.addr %s262, 48
      %s267 = sadd.s32 %s265, %s266
      %s268 = smul.addr %s267, 8
      %s269 = scalar_lea.vmem %s6, %s268
      %p270 = scmp.lt.s32.totalorder %s21, 1
      %s271 = scalar_select %p270, %s21, 1
      %p272 = scmp.lt.s32.totalorder %s22, 1
      %s273 = scalar_select %p272, %s22, 1
      %s274 = smul.addr %s273, 39
      %s275 = smul.addr %s271, 78
      %s276 = sadd.s32 %s274, %s275
      %s277 = smul.addr %s276, 8
      %s278 = scalar_lea.vmem %s0, %s277
      %p279 = scmp.lt.s32.totalorder %s21, 1
      %s280 = scalar_select %p279, %s21, 1
      %p281 = scmp.lt.s32.totalorder %s22, 1
      %s282 = scalar_select %p281, %s22, 1
      %s283 = smul.addr %s282, 24
      %s284 = smul.addr %s280, 48
      %s285 = sadd.s32 %s283, %s284
      %s286 = smul.addr %s285, 8
      %s287 = scalar_lea.vmem %s6, %s286
      %vm288 = vcmask 24576
      %289 = vst.msk [vmem:[#allocation2] sm:$0x1] %vm288, 0.0
      %vm290 = vcmask 31744
      %291 = vst.msk [vmem:[#allocation2 + $0xf1] sm:$0xff] %vm290, 0.0
      %292 = vst.msk [vmem:[#allocation2 + $0xf9] sm:$0xff] %vm290, 0.0
      %vm293 = vcmask 30720
      %294 = vst.msk [vmem:[#allocation2 + $0x101] sm:$0x7f] %vm293, 0.0
      %v295 = vld [vmem:[%s278] sm:$0xff]
      %v296 = vld [vmem:[%s278 + $0x8] sm:$0xff]
      %v297 = vld [vmem:[%s278 + $0x10] sm:$0xff]
      %v298 = vld [vmem:[%s278 + $0x18] sm:$0xff]
      %v299 = vld [vmem:[%s278 + $0x20] sm:$0xff]
      %v300 = vld [vmem:[%s278 + $0x28] sm:$0xff]
      %v301 = vld [vmem:[%s278 + $0x30] sm:$0xff]
      %v302 = vld [vmem:[%s278 + $0x38] sm:$0xff]
      %v303 = vld [vmem:[%s278 + $0x40] sm:$0xff]
      %v304 = vld [vmem:[%s278 + $0x48] sm:$0xff]
      %v305 = vld [vmem:[%s278 + $0x50] sm:$0xff]
      %v306 = vld [vmem:[%s278 + $0x58] sm:$0xff]
      %v307 = vld [vmem:[%s278 + $0x60] sm:$0xff]
      %v308 = vld [vmem:[%s278 + $0x68] sm:$0xff]
      %v309 = vld [vmem:[%s278 + $0x70] sm:$0xff]
      %v310 = vld [vmem:[%s278 + $0x78] sm:$0xff]
      %v311 = vld [vmem:[%s278 + $0x80] sm:$0xff]
      %v312 = vld [vmem:[%s278 + $0x88] sm:$0xff]
      %v313 = vld [vmem:[%s278 + $0x90] sm:$0xff]
      %v314 = vld [vmem:[%s278 + $0x98] sm:$0xff]
      %v315 = vld [vmem:[%s278 + $0xa0] sm:$0xff]
      %v316 = vld [vmem:[%s278 + $0xa8] sm:$0xff]
      %v317 = vld [vmem:[%s278 + $0xb0] sm:$0xff]
      %v318 = vld [vmem:[%s278 + $0xb8] sm:$0xff]
      %v319 = vld [vmem:[%s278 + $0xc0] sm:$0xff]
      %v320 = vld [vmem:[%s278 + $0xc8] sm:$0xff]
      %v321 = vld [vmem:[%s278 + $0xd0] sm:$0xff]
      %v322 = vld [vmem:[%s278 + $0xd8] sm:$0xff]
      %v323 = vld [vmem:[%s278 + $0xe0] sm:$0xff]
      %v324 = vld [vmem:[%s278 + $0xe8] sm:$0xff]
      %v325 = vld [vmem:[%s278 + $0x1] sm:$0xff]
      %v326 = vld [vmem:[%s278 + $0x9] sm:$0xff]
      %v327 = vld [vmem:[%s278 + $0x11] sm:$0xff]
      %v328 = vld [vmem:[%s278 + $0x19] sm:$0xff]
      %v329 = vld [vmem:[%s278 + $0x21] sm:$0xff]
      %v330 = vld [vmem:[%s278 + $0x29] sm:$0xff]
      %v331 = vld [vmem:[%s278 + $0x31] sm:$0xff]
      %v332 = vld [vmem:[%s278 + $0x39] sm:$0xff]
      %v333 = vld [vmem:[%s278 + $0x41] sm:$0xff]
      %v334 = vld [vmem:[%s278 + $0x49] sm:$0xff]
      %v335 = vld [vmem:[%s278 + $0x51] sm:$0xff]
      %v336 = vld [vmem:[%s278 + $0x59] sm:$0xff]
      %v337 = vld [vmem:[%s278 + $0x61] sm:$0xff]
      %v338 = vld [vmem:[%s278 + $0x69] sm:$0xff]
      %v339 = vld [vmem:[%s278 + $0x71] sm:$0xff]
      %v340 = vld [vmem:[%s278 + $0x79] sm:$0xff]
      %v341 = vld [vmem:[%s278 + $0x81] sm:$0xff]
      %v342 = vld [vmem:[%s278 + $0x89] sm:$0xff]
      %v343 = vld [vmem:[%s278 + $0x91] sm:$0xff]
      %v344 = vld [vmem:[%s278 + $0x99] sm:$0xff]
      %v345 = vld [vmem:[%s278 + $0xa1] sm:$0xff]
      %v346 = vld [vmem:[%s278 + $0xa9] sm:$0xff]
      %v347 = vld [vmem:[%s278 + $0xb1] sm:$0xff]
      %v348 = vld [vmem:[%s278 + $0xb9] sm:$0xff]
      %v349 = vld [vmem:[%s278 + $0xc1] sm:$0xff]
      %v350 = vld [vmem:[%s278 + $0xc9] sm:$0xff]
      %v351 = vld [vmem:[%s278 + $0xd1] sm:$0xff]
      %v352 = vld [vmem:[%s278 + $0xd9] sm:$0xff]
      %v353 = vld [vmem:[%s278 + $0xe1] sm:$0xff]
      %v354 = vld [vmem:[%s278 + $0xe9] sm:$0xff]
      %v355 = vld [vmem:[%s278 + $0x2] sm:$0xff]
      %v356 = vld [vmem:[%s278 + $0xa] sm:$0xff]
      %v357 = vld [vmem:[%s278 + $0x12] sm:$0xff]
      %v358 = vld [vmem:[%s278 + $0x1a] sm:$0xff]
      %v359 = vld [vmem:[%s278 + $0x22] sm:$0xff]
      %v360 = vld [vmem:[%s278 + $0x2a] sm:$0xff]
      %v361 = vld [vmem:[%s278 + $0x32] sm:$0xff]
      %v362 = vld [vmem:[%s278 + $0x3a] sm:$0xff]
      %v363 = vld [vmem:[%s278 + $0x42] sm:$0xff]
      %v364 = vld [vmem:[%s278 + $0x4a] sm:$0xff]
      %v365 = vld [vmem:[%s278 + $0x52] sm:$0xff]
      %v366 = vld [vmem:[%s278 + $0x5a] sm:$0xff]
      %v367 = vld [vmem:[%s278 + $0x62] sm:$0xff]
      %v368 = vld [vmem:[%s278 + $0x6a] sm:$0xff]
      %v369 = vld [vmem:[%s278 + $0x72] sm:$0xff]
      %v370 = vld [vmem:[%s278 + $0x7a] sm:$0xff]
      %v371 = vld [vmem:[%s278 + $0x82] sm:$0xff]
      %v372 = vld [vmem:[%s278 + $0x8a] sm:$0xff]
      %v373 = vld [vmem:[%s278 + $0x92] sm:$0xff]
      %v374 = vld [vmem:[%s278 + $0x9a] sm:$0xff]
      %v375 = vld [vmem:[%s278 + $0xa2] sm:$0xff]
      %v376 = vld [vmem:[%s278 + $0xaa] sm:$0xff]
      %v377 = vld [vmem:[%s278 + $0xb2] sm:$0xff]
      %v378 = vld [vmem:[%s278 + $0xba] sm:$0xff]
      %v379 = vld [vmem:[%s278 + $0xc2] sm:$0xff]
      %v380 = vld [vmem:[%s278 + $0xca] sm:$0xff]
      %v381 = vld [vmem:[%s278 + $0xd2] sm:$0xff]
      %v382 = vld [vmem:[%s278 + $0xda] sm:$0xff]
      %v383 = vld [vmem:[%s278 + $0xe2] sm:$0xff]
      %v384 = vld [vmem:[%s278 + $0xea] sm:$0xff]
      %v385 = vld [vmem:[%s278 + $0xf0] sm:$0xff]
      %v386 = vld [vmem:[%s278 + $0xf8] sm:$0xff]
      %v387 = vld [vmem:[%s278 + $0x100] sm:$0xff]
      %v388 = vld [vmem:[%s278 + $0xf1] sm:$0xff]
      %v389 = vld [vmem:[%s278 + $0xf9] sm:$0xff]
      %v390 = vld [vmem:[%s278 + $0x101] sm:$0xff]
      %v391 = vld [vmem:[%s278 + $0xf2] sm:$0xff]
      %v392 = vld [vmem:[%s278 + $0xfa] sm:$0xff]
      %v393 = vld [vmem:[%s278 + $0x102] sm:$0xff]
      %v394 = vld [vmem:[%s278 + $0x108] sm:$0xff]
      %v395 = vld [vmem:[%s278 + $0x110] sm:$0xff]
      %v396 = vld [vmem:[%s278 + $0x118] sm:$0xff]
      %v397 = vld [vmem:[%s278 + $0x109] sm:$0xff]
      %v398 = vld [vmem:[%s278 + $0x111] sm:$0xff]
      %v399 = vld [vmem:[%s278 + $0x119] sm:$0xff]
      %v400 = vld [vmem:[%s278 + $0x10a] sm:$0xff]
      %v401 = vld [vmem:[%s278 + $0x112] sm:$0xff]
      %v402 = vld [vmem:[%s278 + $0x11a] sm:$0xff]
      %433 = vrot.lane.b32.xlu0 %v325, 4
      %v434 = vpop.permute.xlu0 %433
      %435 = vrot.lane.b32.xlu0 %v326, 4
      %v436 = vpop.permute.xlu0 %435
      %437 = vrot.lane.b32.xlu0 %v327, 4
      %v438 = vpop.permute.xlu0 %437
      %439 = vrot.lane.b32.xlu0 %v328, 4
      %v440 = vpop.permute.xlu0 %439
      %441 = vrot.lane.b32.xlu0 %v329, 4
      %v442 = vpop.permute.xlu0 %441
      %443 = vrot.lane.b32.xlu0 %v330, 4
      %v444 = vpop.permute.xlu0 %443
      %445 = vrot.lane.b32.xlu0 %v331, 4
      %v446 = vpop.permute.xlu0 %445
      %447 = vrot.lane.b32.xlu0 %v332, 4
      %v448 = vpop.permute.xlu0 %447
      %449 = vrot.lane.b32.xlu0 %v333, 4
      %v450 = vpop.permute.xlu0 %449
      %451 = vrot.lane.b32.xlu0 %v334, 4
      %v452 = vpop.permute.xlu0 %451
      %453 = vrot.lane.b32.xlu0 %v335, 4
      %v454 = vpop.permute.xlu0 %453
      %455 = vrot.lane.b32.xlu0 %v336, 4
      %v456 = vpop.permute.xlu0 %455
      %457 = vrot.lane.b32.xlu0 %v337, 4
      %v458 = vpop.permute.xlu0 %457
      %459 = vrot.lane.b32.xlu0 %v338, 4
      %v460 = vpop.permute.xlu0 %459
      %461 = vrot.lane.b32.xlu0 %v339, 4
      %v462 = vpop.permute.xlu0 %461
      %463 = vrot.lane.b32.xlu0 %v340, 4
      %v464 = vpop.permute.xlu0 %463
      %465 = vrot.lane.b32.xlu0 %v341, 4
      %v466 = vpop.permute.xlu0 %465
      %467 = vrot.lane.b32.xlu0 %v342, 4
      %v468 = vpop.permute.xlu0 %467
      %469 = vrot.lane.b32.xlu0 %v343, 4
      %v470 = vpop.permute.xlu0 %469
      %471 = vrot.lane.b32.xlu0 %v344, 4
      %v472 = vpop.permute.xlu0 %471
      %473 = vrot.lane.b32.xlu0 %v345, 4
      %v474 = vpop.permute.xlu0 %473
      %475 = vrot.lane.b32.xlu0 %v346, 4
      %v476 = vpop.permute.xlu0 %475
      %477 = vrot.lane.b32.xlu0 %v347, 4
      %v478 = vpop.permute.xlu0 %477
      %479 = vrot.lane.b32.xlu0 %v348, 4
      %v480 = vpop.permute.xlu0 %479
      %481 = vrot.lane.b32.xlu0 %v349, 4
      %v482 = vpop.permute.xlu0 %481
      %483 = vrot.lane.b32.xlu0 %v350, 4
      %v484 = vpop.permute.xlu0 %483
      %485 = vrot.lane.b32.xlu0 %v351, 4
      %v486 = vpop.permute.xlu0 %485
      %487 = vrot.lane.b32.xlu0 %v352, 4
      %v488 = vpop.permute.xlu0 %487
      %489 = vrot.lane.b32.xlu0 %v353, 4
      %v490 = vpop.permute.xlu0 %489
      %491 = vrot.lane.b32.xlu0 %v354, 4
      %v492 = vpop.permute.xlu0 %491
      %553 = vrot.lane.b32.xlu0 %v355, 8
      %v554 = vpop.permute.xlu0 %553
      %555 = vrot.lane.b32.xlu0 %v356, 8
      %v556 = vpop.permute.xlu0 %555
      %557 = vrot.lane.b32.xlu0 %v357, 8
      %v558 = vpop.permute.xlu0 %557
      %559 = vrot.lane.b32.xlu0 %v358, 8
      %v560 = vpop.permute.xlu0 %559
      %561 = vrot.lane.b32.xlu0 %v359, 8
      %v562 = vpop.permute.xlu0 %561
      %563 = vrot.lane.b32.xlu0 %v360, 8
      %v564 = vpop.permute.xlu0 %563
      %565 = vrot.lane.b32.xlu0 %v361, 8
      %v566 = vpop.permute.xlu0 %565
      %567 = vrot.lane.b32.xlu0 %v362, 8
      %v568 = vpop.permute.xlu0 %567
      %569 = vrot.lane.b32.xlu0 %v363, 8
      %v570 = vpop.permute.xlu0 %569
      %571 = vrot.lane.b32.xlu0 %v364, 8
      %v572 = vpop.permute.xlu0 %571
      %573 = vrot.lane.b32.xlu0 %v365, 8
      %v574 = vpop.permute.xlu0 %573
      %575 = vrot.lane.b32.xlu0 %v366, 8
      %v576 = vpop.permute.xlu0 %575
      %577 = vrot.lane.b32.xlu0 %v367, 8
      %v578 = vpop.permute.xlu0 %577
      %579 = vrot.lane.b32.xlu0 %v368, 8
      %v580 = vpop.permute.xlu0 %579
      %581 = vrot.lane.b32.xlu0 %v369, 8
      %v582 = vpop.permute.xlu0 %581
      %583 = vrot.lane.b32.xlu0 %v370, 8
      %v584 = vpop.permute.xlu0 %583
      %585 = vrot.lane.b32.xlu0 %v371, 8
      %v586 = vpop.permute.xlu0 %585
      %587 = vrot.lane.b32.xlu0 %v372, 8
      %v588 = vpop.permute.xlu0 %587
      %589 = vrot.lane.b32.xlu0 %v373, 8
      %v590 = vpop.permute.xlu0 %589
      %591 = vrot.lane.b32.xlu0 %v374, 8
      %v592 = vpop.permute.xlu0 %591
      %593 = vrot.lane.b32.xlu0 %v375, 8
      %v594 = vpop.permute.xlu0 %593
      %595 = vrot.lane.b32.xlu0 %v376, 8
      %v596 = vpop.permute.xlu0 %595
      %597 = vrot.lane.b32.xlu0 %v377, 8
      %v598 = vpop.permute.xlu0 %597
      %599 = vrot.lane.b32.xlu0 %v378, 8
      %v600 = vpop.permute.xlu0 %599
      %601 = vrot.lane.b32.xlu0 %v379, 8
      %v602 = vpop.permute.xlu0 %601
      %603 = vrot.lane.b32.xlu0 %v380, 8
      %v604 = vpop.permute.xlu0 %603
      %605 = vrot.lane.b32.xlu0 %v381, 8
      %v606 = vpop.permute.xlu0 %605
      %607 = vrot.lane.b32.xlu0 %v382, 8
      %v608 = vpop.permute.xlu0 %607
      %609 = vrot.lane.b32.xlu0 %v383, 8
      %v610 = vpop.permute.xlu0 %609
      %611 = vrot.lane.b32.xlu0 %v384, 8
      %v612 = vpop.permute.xlu0 %611
      %673 = vrot.lane.b32.xlu0 %v298, 12
      %v674 = vpop.permute.xlu0 %673
      %675 = vrot.lane.b32.xlu0 %v299, 12
      %v676 = vpop.permute.xlu0 %675
      %677 = vrot.lane.b32.xlu0 %v300, 12
      %v678 = vpop.permute.xlu0 %677
      %679 = vrot.lane.b32.xlu0 %v301, 12
      %v680 = vpop.permute.xlu0 %679
      %681 = vrot.lane.b32.xlu0 %v302, 12
      %v682 = vpop.permute.xlu0 %681
      %683 = vrot.lane.b32.xlu0 %v303, 12
      %v684 = vpop.permute.xlu0 %683
      %685 = vrot.lane.b32.xlu0 %v304, 12
      %v686 = vpop.permute.xlu0 %685
      %687 = vrot.lane.b32.xlu0 %v305, 12
      %v688 = vpop.permute.xlu0 %687
      %689 = vrot.lane.b32.xlu0 %v306, 12
      %v690 = vpop.permute.xlu0 %689
      %691 = vrot.lane.b32.xlu0 %v307, 12
      %v692 = vpop.permute.xlu0 %691
      %693 = vrot.lane.b32.xlu0 %v308, 12
      %v694 = vpop.permute.xlu0 %693
      %695 = vrot.lane.b32.xlu0 %v309, 12
      %v696 = vpop.permute.xlu0 %695
      %697 = vrot.lane.b32.xlu0 %v310, 12
      %v698 = vpop.permute.xlu0 %697
      %699 = vrot.lane.b32.xlu0 %v311, 12
      %v700 = vpop.permute.xlu0 %699
      %701 = vrot.lane.b32.xlu0 %v312, 12
      %v702 = vpop.permute.xlu0 %701
      %703 = vrot.lane.b32.xlu0 %v313, 12
      %v704 = vpop.permute.xlu0 %703
      %705 = vrot.lane.b32.xlu0 %v314, 12
      %v706 = vpop.permute.xlu0 %705
      %707 = vrot.lane.b32.xlu0 %v315, 12
      %v708 = vpop.permute.xlu0 %707
      %709 = vrot.lane.b32.xlu0 %v316, 12
      %v710 = vpop.permute.xlu0 %709
      %711 = vrot.lane.b32.xlu0 %v317, 12
      %v712 = vpop.permute.xlu0 %711
      %713 = vrot.lane.b32.xlu0 %v318, 12
      %v714 = vpop.permute.xlu0 %713
      %715 = vrot.lane.b32.xlu0 %v319, 12
      %v716 = vpop.permute.xlu0 %715
      %717 = vrot.lane.b32.xlu0 %v320, 12
      %v718 = vpop.permute.xlu0 %717
      %719 = vrot.lane.b32.xlu0 %v321, 12
      %v720 = vpop.permute.xlu0 %719
      %721 = vrot.lane.b32.xlu0 %v322, 12
      %v722 = vpop.permute.xlu0 %721
      %723 = vrot.lane.b32.xlu0 %v323, 12
      %v724 = vpop.permute.xlu0 %723
      %725 = vrot.lane.b32.xlu0 %v324, 12
      %v726 = vpop.permute.xlu0 %725
      %727 = vrot.lane.b32.xlu0 %v385, 12
      %v728 = vpop.permute.xlu0 %727
      %729 = vrot.lane.b32.xlu0 %v386, 12
      %v730 = vpop.permute.xlu0 %729
      %731 = vrot.lane.b32.xlu0 %v387, 12
      %v732 = vpop.permute.xlu0 %731
      %766 = vrot.lane.b32.xlu0 %v328, 16
      %v767 = vpop.permute.xlu0 %766
      %768 = vrot.lane.b32.xlu0 %v329, 16
      %v769 = vpop.permute.xlu0 %768
      %770 = vrot.lane.b32.xlu0 %v330, 16
      %v771 = vpop.permute.xlu0 %770
      %772 = vrot.lane.b32.xlu0 %v331, 16
      %v773 = vpop.permute.xlu0 %772
      %774 = vrot.lane.b32.xlu0 %v332, 16
      %v775 = vpop.permute.xlu0 %774
      %776 = vrot.lane.b32.xlu0 %v333, 16
      %v777 = vpop.permute.xlu0 %776
      %778 = vrot.lane.b32.xlu0 %v334, 16
      %v779 = vpop.permute.xlu0 %778
      %780 = vrot.lane.b32.xlu0 %v335, 16
      %v781 = vpop.permute.xlu0 %780
      %782 = vrot.lane.b32.xlu0 %v336, 16
      %v783 = vpop.permute.xlu0 %782
      %784 = vrot.lane.b32.xlu0 %v337, 16
      %v785 = vpop.permute.xlu0 %784
      %786 = vrot.lane.b32.xlu0 %v338, 16
      %v787 = vpop.permute.xlu0 %786
      %788 = vrot.lane.b32.xlu0 %v339, 16
      %v789 = vpop.permute.xlu0 %788
      %790 = vrot.lane.b32.xlu0 %v340, 16
      %v791 = vpop.permute.xlu0 %790
      %792 = vrot.lane.b32.xlu0 %v341, 16
      %v793 = vpop.permute.xlu0 %792
      %794 = vrot.lane.b32.xlu0 %v342, 16
      %v795 = vpop.permute.xlu0 %794
      %796 = vrot.lane.b32.xlu0 %v343, 16
      %v797 = vpop.permute.xlu0 %796
      %798 = vrot.lane.b32.xlu0 %v344, 16
      %v799 = vpop.permute.xlu0 %798
      %800 = vrot.lane.b32.xlu0 %v345, 16
      %v801 = vpop.permute.xlu0 %800
      %802 = vrot.lane.b32.xlu0 %v346, 16
      %v803 = vpop.permute.xlu0 %802
      %804 = vrot.lane.b32.xlu0 %v347, 16
      %v805 = vpop.permute.xlu0 %804
      %806 = vrot.lane.b32.xlu0 %v348, 16
      %v807 = vpop.permute.xlu0 %806
      %808 = vrot.lane.b32.xlu0 %v349, 16
      %v809 = vpop.permute.xlu0 %808
      %810 = vrot.lane.b32.xlu0 %v350, 16
      %v811 = vpop.permute.xlu0 %810
      %812 = vrot.lane.b32.xlu0 %v351, 16
      %v813 = vpop.permute.xlu0 %812
      %814 = vrot.lane.b32.xlu0 %v352, 16
      %v815 = vpop.permute.xlu0 %814
      %816 = vrot.lane.b32.xlu0 %v353, 16
      %v817 = vpop.permute.xlu0 %816
      %818 = vrot.lane.b32.xlu0 %v354, 16
      %v819 = vpop.permute.xlu0 %818
      %820 = vrot.lane.b32.xlu0 %v388, 16
      %v821 = vpop.permute.xlu0 %820
      %822 = vrot.lane.b32.xlu0 %v389, 16
      %v823 = vpop.permute.xlu0 %822
      %824 = vrot.lane.b32.xlu0 %v390, 16
      %v825 = vpop.permute.xlu0 %824
      %859 = vrot.lane.b32.xlu0 %v358, 20
      %v860 = vpop.permute.xlu0 %859
      %861 = vrot.lane.b32.xlu0 %v359, 20
      %v862 = vpop.permute.xlu0 %861
      %863 = vrot.lane.b32.xlu0 %v360, 20
      %v864 = vpop.permute.xlu0 %863
      %865 = vrot.lane.b32.xlu0 %v361, 20
      %v866 = vpop.permute.xlu0 %865
      %867 = vrot.lane.b32.xlu0 %v362, 20
      %v868 = vpop.permute.xlu0 %867
      %869 = vrot.lane.b32.xlu0 %v363, 20
      %v870 = vpop.permute.xlu0 %869
      %871 = vrot.lane.b32.xlu0 %v364, 20
      %v872 = vpop.permute.xlu0 %871
      %873 = vrot.lane.b32.xlu0 %v365, 20
      %v874 = vpop.permute.xlu0 %873
      %875 = vrot.lane.b32.xlu0 %v366, 20
      %v876 = vpop.permute.xlu0 %875
      %877 = vrot.lane.b32.xlu0 %v367, 20
      %v878 = vpop.permute.xlu0 %877
      %879 = vrot.lane.b32.xlu0 %v368, 20
      %v880 = vpop.permute.xlu0 %879
      %881 = vrot.lane.b32.xlu0 %v369, 20
      %v882 = vpop.permute.xlu0 %881
      %883 = vrot.lane.b32.xlu0 %v370, 20
      %v884 = vpop.permute.xlu0 %883
      %885 = vrot.lane.b32.xlu0 %v371, 20
      %v886 = vpop.permute.xlu0 %885
      %887 = vrot.lane.b32.xlu0 %v372, 20
      %v888 = vpop.permute.xlu0 %887
      %889 = vrot.lane.b32.xlu0 %v373, 20
      %v890 = vpop.permute.xlu0 %889
      %891 = vrot.lane.b32.xlu0 %v374, 20
      %v892 = vpop.permute.xlu0 %891
      %893 = vrot.lane.b32.xlu0 %v375, 20
      %v894 = vpop.permute.xlu0 %893
      %895 = vrot.lane.b32.xlu0 %v376, 20
      %v896 = vpop.permute.xlu0 %895
      %897 = vrot.lane.b32.xlu0 %v377, 20
      %v898 = vpop.permute.xlu0 %897
      %899 = vrot.lane.b32.xlu0 %v378, 20
      %v900 = vpop.permute.xlu0 %899
      %901 = vrot.lane.b32.xlu0 %v379, 20
      %v902 = vpop.permute.xlu0 %901
      %903 = vrot.lane.b32.xlu0 %v380, 20
      %v904 = vpop.permute.xlu0 %903
      %905 = vrot.lane.b32.xlu0 %v381, 20
      %v906 = vpop.permute.xlu0 %905
      %907 = vrot.lane.b32.xlu0 %v382, 20
      %v908 = vpop.permute.xlu0 %907
      %909 = vrot.lane.b32.xlu0 %v383, 20
      %v910 = vpop.permute.xlu0 %909
      %911 = vrot.lane.b32.xlu0 %v384, 20
      %v912 = vpop.permute.xlu0 %911
      %913 = vrot.lane.b32.xlu0 %v391, 20
      %v914 = vpop.permute.xlu0 %913
      %915 = vrot.lane.b32.xlu0 %v392, 20
      %v916 = vpop.permute.xlu0 %915
      %917 = vrot.lane.b32.xlu0 %v393, 20
      %v918 = vpop.permute.xlu0 %917
      %952 = vrot.lane.b32.xlu0 %v301, 24
      %v953 = vpop.permute.xlu0 %952
      %954 = vrot.lane.b32.xlu0 %v302, 24
      %v955 = vpop.permute.xlu0 %954
      %956 = vrot.lane.b32.xlu0 %v303, 24
      %v957 = vpop.permute.xlu0 %956
      %958 = vrot.lane.b32.xlu0 %v304, 24
      %v959 = vpop.permute.xlu0 %958
      %960 = vrot.lane.b32.xlu0 %v305, 24
      %v961 = vpop.permute.xlu0 %960
      %962 = vrot.lane.b32.xlu0 %v306, 24
      %v963 = vpop.permute.xlu0 %962
      %964 = vrot.lane.b32.xlu0 %v307, 24
      %v965 = vpop.permute.xlu0 %964
      %966 = vrot.lane.b32.xlu0 %v308, 24
      %v967 = vpop.permute.xlu0 %966
      %968 = vrot.lane.b32.xlu0 %v309, 24
      %v969 = vpop.permute.xlu0 %968
      %970 = vrot.lane.b32.xlu0 %v310, 24
      %v971 = vpop.permute.xlu0 %970
      %972 = vrot.lane.b32.xlu0 %v311, 24
      %v973 = vpop.permute.xlu0 %972
      %974 = vrot.lane.b32.xlu0 %v312, 24
      %v975 = vpop.permute.xlu0 %974
      %976 = vrot.lane.b32.xlu0 %v313, 24
      %v977 = vpop.permute.xlu0 %976
      %978 = vrot.lane.b32.xlu0 %v314, 24
      %v979 = vpop.permute.xlu0 %978
      %980 = vrot.lane.b32.xlu0 %v315, 24
      %v981 = vpop.permute.xlu0 %980
      %982 = vrot.lane.b32.xlu0 %v316, 24
      %v983 = vpop.permute.xlu0 %982
      %984 = vrot.lane.b32.xlu0 %v317, 24
      %v985 = vpop.permute.xlu0 %984
      %986 = vrot.lane.b32.xlu0 %v318, 24
      %v987 = vpop.permute.xlu0 %986
      %988 = vrot.lane.b32.xlu0 %v319, 24
      %v989 = vpop.permute.xlu0 %988
      %990 = vrot.lane.b32.xlu0 %v320, 24
      %v991 = vpop.permute.xlu0 %990
      %992 = vrot.lane.b32.xlu0 %v321, 24
      %v993 = vpop.permute.xlu0 %992
      %994 = vrot.lane.b32.xlu0 %v322, 24
      %v995 = vpop.permute.xlu0 %994
      %996 = vrot.lane.b32.xlu0 %v323, 24
      %v997 = vpop.permute.xlu0 %996
      %998 = vrot.lane.b32.xlu0 %v324, 24
      %v999 = vpop.permute.xlu0 %998
      %1000 = vrot.lane.b32.xlu0 %v385, 24
      %v1001 = vpop.permute.xlu0 %1000
      %1002 = vrot.lane.b32.xlu0 %v386, 24
      %v1003 = vpop.permute.xlu0 %1002
      %1004 = vrot.lane.b32.xlu0 %v387, 24
      %v1005 = vpop.permute.xlu0 %1004
      %1006 = vrot.lane.b32.xlu0 %v394, 24
      %v1007 = vpop.permute.xlu0 %1006
      %1008 = vrot.lane.b32.xlu0 %v395, 24
      %v1009 = vpop.permute.xlu0 %1008
      %1010 = vrot.lane.b32.xlu0 %v396, 24
      %v1011 = vpop.permute.xlu0 %1010
      %1045 = vrot.lane.b32.xlu0 %v331, 28
      %v1046 = vpop.permute.xlu0 %1045
      %1047 = vrot.lane.b32.xlu0 %v332, 28
      %v1048 = vpop.permute.xlu0 %1047
      %1049 = vrot.lane.b32.xlu0 %v333, 28
      %v1050 = vpop.permute.xlu0 %1049
      %1051 = vrot.lane.b32.xlu0 %v334, 28
      %v1052 = vpop.permute.xlu0 %1051
      %1053 = vrot.lane.b32.xlu0 %v335, 28
      %v1054 = vpop.permute.xlu0 %1053
      %1055 = vrot.lane.b32.xlu0 %v336, 28
      %v1056 = vpop.permute.xlu0 %1055
      %1057 = vrot.lane.b32.xlu0 %v337, 28
      %v1058 = vpop.permute.xlu0 %1057
      %1059 = vrot.lane.b32.xlu0 %v338, 28
      %v1060 = vpop.permute.xlu0 %1059
      %1061 = vrot.lane.b32.xlu0 %v339, 28
      %v1062 = vpop.permute.xlu0 %1061
      %1063 = vrot.lane.b32.xlu0 %v340, 28
      %v1064 = vpop.permute.xlu0 %1063
      %1065 = vrot.lane.b32.xlu0 %v341, 28
      %v1066 = vpop.permute.xlu0 %1065
      %1067 = vrot.lane.b32.xlu0 %v342, 28
      %v1068 = vpop.permute.xlu0 %1067
      %1069 = vrot.lane.b32.xlu0 %v343, 28
      %v1070 = vpop.permute.xlu0 %1069
      %1071 = vrot.lane.b32.xlu0 %v344, 28
      %v1072 = vpop.permute.xlu0 %1071
      %1073 = vrot.lane.b32.xlu0 %v345, 28
      %v1074 = vpop.permute.xlu0 %1073
      %1075 = vrot.lane.b32.xlu0 %v346, 28
      %v1076 = vpop.permute.xlu0 %1075
      %1077 = vrot.lane.b32.xlu0 %v347, 28
      %v1078 = vpop.permute.xlu0 %1077
      %1079 = vrot.lane.b32.xlu0 %v348, 28
      %v1080 = vpop.permute.xlu0 %1079
      %1081 = vrot.lane.b32.xlu0 %v349, 28
      %v1082 = vpop.permute.xlu0 %1081
      %1083 = vrot.lane.b32.xlu0 %v350, 28
      %v1084 = vpop.permute.xlu0 %1083
      %1085 = vrot.lane.b32.xlu0 %v351, 28
      %v1086 = vpop.permute.xlu0 %1085
      %1087 = vrot.lane.b32.xlu0 %v352, 28
      %v1088 = vpop.permute.xlu0 %1087
      %1089 = vrot.lane.b32.xlu0 %v353, 28
      %v1090 = vpop.permute.xlu0 %1089
      %1091 = vrot.lane.b32.xlu0 %v354, 28
      %v1092 = vpop.permute.xlu0 %1091
      %1093 = vrot.lane.b32.xlu0 %v388, 28
      %v1094 = vpop.permute.xlu0 %1093
      %1095 = vrot.lane.b32.xlu0 %v389, 28
      %v1096 = vpop.permute.xlu0 %1095
      %1097 = vrot.lane.b32.xlu0 %v390, 28
      %v1098 = vpop.permute.xlu0 %1097
      %1099 = vrot.lane.b32.xlu0 %v397, 28
      %v1100 = vpop.permute.xlu0 %1099
      %1101 = vrot.lane.b32.xlu0 %v398, 28
      %v1102 = vpop.permute.xlu0 %1101
      %1103 = vrot.lane.b32.xlu0 %v399, 28
      %v1104 = vpop.permute.xlu0 %1103
      %1138 = vrot.lane.b32.xlu0 %v361, 32
      %v1139 = vpop.permute.xlu0 %1138
      %1140 = vrot.lane.b32.xlu0 %v362, 32
      %v1141 = vpop.permute.xlu0 %1140
      %1142 = vrot.lane.b32.xlu0 %v363, 32
      %v1143 = vpop.permute.xlu0 %1142
      %1144 = vrot.lane.b32.xlu0 %v364, 32
      %v1145 = vpop.permute.xlu0 %1144
      %1146 = vrot.lane.b32.xlu0 %v365, 32
      %v1147 = vpop.permute.xlu0 %1146
      %1148 = vrot.lane.b32.xlu0 %v366, 32
      %v1149 = vpop.permute.xlu0 %1148
      %1150 = vrot.lane.b32.xlu0 %v367, 32
      %v1151 = vpop.permute.xlu0 %1150
      %1152 = vrot.lane.b32.xlu0 %v368, 32
      %v1153 = vpop.permute.xlu0 %1152
      %1154 = vrot.lane.b32.xlu0 %v369, 32
      %v1155 = vpop.permute.xlu0 %1154
      %1156 = vrot.lane.b32.xlu0 %v370, 32
      %v1157 = vpop.permute.xlu0 %1156
      %1158 = vrot.lane.b32.xlu0 %v371, 32
      %v1159 = vpop.permute.xlu0 %1158
      %1160 = vrot.lane.b32.xlu0 %v372, 32
      %v1161 = vpop.permute.xlu0 %1160
      %1162 = vrot.lane.b32.xlu0 %v373, 32
      %v1163 = vpop.permute.xlu0 %1162
      %1164 = vrot.lane.b32.xlu0 %v374, 32
      %v1165 = vpop.permute.xlu0 %1164
      %1166 = vrot.lane.b32.xlu0 %v375, 32
      %v1167 = vpop.permute.xlu0 %1166
      %1168 = vrot.lane.b32.xlu0 %v376, 32
      %v1169 = vpop.permute.xlu0 %1168
      %1170 = vrot.lane.b32.xlu0 %v377, 32
      %v1171 = vpop.permute.xlu0 %1170
      %1172 = vrot.lane.b32.xlu0 %v378, 32
      %v1173 = vpop.permute.xlu0 %1172
      %1174 = vrot.lane.b32.xlu0 %v379, 32
      %v1175 = vpop.permute.xlu0 %1174
      %1176 = vrot.lane.b32.xlu0 %v380, 32
      %v1177 = vpop.permute.xlu0 %1176
      %1178 = vrot.lane.b32.xlu0 %v381, 32
      %v1179 = vpop.permute.xlu0 %1178
      %1180 = vrot.lane.b32.xlu0 %v382, 32
      %v1181 = vpop.permute.xlu0 %1180
      %1182 = vrot.lane.b32.xlu0 %v383, 32
      %v1183 = vpop.permute.xlu0 %1182
      %1184 = vrot.lane.b32.xlu0 %v384, 32
      %v1185 = vpop.permute.xlu0 %1184
      %1186 = vrot.lane.b32.xlu0 %v391, 32
      %v1187 = vpop.permute.xlu0 %1186
      %1188 = vrot.lane.b32.xlu0 %v392, 32
      %v1189 = vpop.permute.xlu0 %1188
      %1190 = vrot.lane.b32.xlu0 %v393, 32
      %v1191 = vpop.permute.xlu0 %1190
      %1192 = vrot.lane.b32.xlu0 %v400, 32
      %v1193 = vpop.permute.xlu0 %1192
      %1194 = vrot.lane.b32.xlu0 %v401, 32
      %v1195 = vpop.permute.xlu0 %1194
      %1196 = vrot.lane.b32.xlu0 %v402, 32
      %v1197 = vpop.permute.xlu0 %1196
      %v1228 = vsel %vm290, %v295, %v434
      %v1229 = vsel %vm290, %v296, %v436
      %v1230 = vsel %vm290, %v297, %v438
      %v1231 = vsel %vm290, %v298, %v440
      %v1232 = vsel %vm290, %v299, %v442
      %v1233 = vsel %vm290, %v300, %v444
      %v1234 = vsel %vm290, %v301, %v446
      %v1235 = vsel %vm290, %v302, %v448
      %v1236 = vsel %vm290, %v303, %v450
      %v1237 = vsel %vm290, %v304, %v452
      %v1238 = vsel %vm290, %v305, %v454
      %v1239 = vsel %vm290, %v306, %v456
      %v1240 = vsel %vm290, %v307, %v458
      %v1241 = vsel %vm290, %v308, %v460
      %v1242 = vsel %vm290, %v309, %v462
      %v1243 = vsel %vm290, %v310, %v464
      %v1244 = vsel %vm290, %v311, %v466
      %v1245 = vsel %vm290, %v312, %v468
      %v1246 = vsel %vm290, %v313, %v470
      %v1247 = vsel %vm290, %v314, %v472
      %v1248 = vsel %vm290, %v315, %v474
      %v1249 = vsel %vm290, %v316, %v476
      %v1250 = vsel %vm290, %v317, %v478
      %v1251 = vsel %vm290, %v318, %v480
      %v1252 = vsel %vm290, %v319, %v482
      %v1253 = vsel %vm290, %v320, %v484
      %v1254 = vsel %vm290, %v321, %v486
      %v1255 = vsel %vm290, %v322, %v488
      %v1256 = vsel %vm290, %v323, %v490
      %v1257 = vsel %vm290, %v324, %v492
      %vm1258 = vcmask 64512
      %v1259 = vsel %vm1258, %v1228, %v554
      %v1260 = vsel %vm1258, %v1229, %v556
      %v1261 = vsel %vm1258, %v1230, %v558
      %v1262 = vsel %vm1258, %v1231, %v560
      %v1263 = vsel %vm1258, %v1232, %v562
      %v1264 = vsel %vm1258, %v1233, %v564
      %v1265 = vsel %vm1258, %v1234, %v566
      %v1266 = vsel %vm1258, %v1235, %v568
      %v1267 = vsel %vm1258, %v1236, %v570
      %v1268 = vsel %vm1258, %v1237, %v572
      %v1269 = vsel %vm1258, %v1238, %v574
      %v1270 = vsel %vm1258, %v1239, %v576
      %v1271 = vsel %vm1258, %v1240, %v578
      %v1272 = vsel %vm1258, %v1241, %v580
      %v1273 = vsel %vm1258, %v1242, %v582
      %v1274 = vsel %vm1258, %v1243, %v584
      %v1275 = vsel %vm1258, %v1244, %v586
      %v1276 = vsel %vm1258, %v1245, %v588
      %v1277 = vsel %vm1258, %v1246, %v590
      %v1278 = vsel %vm1258, %v1247, %v592
      %v1279 = vsel %vm1258, %v1248, %v594
      %v1280 = vsel %vm1258, %v1249, %v596
      %v1281 = vsel %vm1258, %v1250, %v598
      %v1282 = vsel %vm1258, %v1251, %v600
      %v1283 = vsel %vm1258, %v1252, %v602
      %v1284 = vsel %vm1258, %v1253, %v604
      %v1285 = vsel %vm1258, %v1254, %v606
      %v1286 = vsel %vm1258, %v1255, %v608
      %v1287 = vsel %vm1258, %v1256, %v610
      %v1288 = vsel %vm1258, %v1257, %v612
      %vm1289 = vcmask 97280
      %v1290 = vsel %vm1289, %v1259, %v674
      %v1291 = vsel %vm1289, %v1260, %v676
      %v1292 = vsel %vm1289, %v1261, %v678
      %v1293 = vsel %vm1289, %v1262, %v680
      %v1294 = vsel %vm1289, %v1263, %v682
      %v1295 = vsel %vm1289, %v1264, %v684
      %v1296 = vsel %vm1289, %v1265, %v686
      %v1297 = vsel %vm1289, %v1266, %v688
      %v1298 = vsel %vm1289, %v1267, %v690
      %v1299 = vsel %vm1289, %v1268, %v692
      %v1300 = vsel %vm1289, %v1269, %v694
      %v1301 = vsel %vm1289, %v1270, %v696
      %v1302 = vsel %vm1289, %v1271, %v698
      %v1303 = vsel %vm1289, %v1272, %v700
      %v1304 = vsel %vm1289, %v1273, %v702
      %v1305 = vsel %vm1289, %v1274, %v704
      %v1306 = vsel %vm1289, %v1275, %v706
      %v1307 = vsel %vm1289, %v1276, %v708
      %v1308 = vsel %vm1289, %v1277, %v710
      %v1309 = vsel %vm1289, %v1278, %v712
      %v1310 = vsel %vm1289, %v1279, %v714
      %v1311 = vsel %vm1289, %v1280, %v716
      %v1312 = vsel %vm1289, %v1281, %v718
      %v1313 = vsel %vm1289, %v1282, %v720
      %v1314 = vsel %vm1289, %v1283, %v722
      %v1315 = vsel %vm1289, %v1284, %v724
      %v1316 = vsel %vm1289, %v1285, %v726
      %v1317 = vsel %vm1289, %v1286, %v728
      %v1318 = vsel %vm1289, %v1287, %v730
      %v1319 = vsel %vm1289, %v1288, %v732
      %vm1320 = vcmask 130048
      %v1321 = vsel %vm1320, %v1290, %v767
      %v1322 = vsel %vm1320, %v1291, %v769
      %v1323 = vsel %vm1320, %v1292, %v771
      %v1324 = vsel %vm1320, %v1293, %v773
      %v1325 = vsel %vm1320, %v1294, %v775
      %v1326 = vsel %vm1320, %v1295, %v777
      %v1327 = vsel %vm1320, %v1296, %v779
      %v1328 = vsel %vm1320, %v1297, %v781
      %v1329 = vsel %vm1320, %v1298, %v783
      %v1330 = vsel %vm1320, %v1299, %v785
      %v1331 = vsel %vm1320, %v1300, %v787
      %v1332 = vsel %vm1320, %v1301, %v789
      %v1333 = vsel %vm1320, %v1302, %v791
      %v1334 = vsel %vm1320, %v1303, %v793
      %v1335 = vsel %vm1320, %v1304, %v795
      %v1336 = vsel %vm1320, %v1305, %v797
      %v1337 = vsel %vm1320, %v1306, %v799
      %v1338 = vsel %vm1320, %v1307, %v801
      %v1339 = vsel %vm1320, %v1308, %v803
      %v1340 = vsel %vm1320, %v1309, %v805
      %v1341 = vsel %vm1320, %v1310, %v807
      %v1342 = vsel %vm1320, %v1311, %v809
      %v1343 = vsel %vm1320, %v1312, %v811
      %v1344 = vsel %vm1320, %v1313, %v813
      %v1345 = vsel %vm1320, %v1314, %v815
      %v1346 = vsel %vm1320, %v1315, %v817
      %v1347 = vsel %vm1320, %v1316, %v819
      %v1348 = vsel %vm1320, %v1317, %v821
      %v1349 = vsel %vm1320, %v1318, %v823
      %v1350 = vsel %vm1320, %v1319, %v825
      %vm1351 = vcmask 162816
      %v1352 = vsel %vm1351, %v1321, %v860
      %v1353 = vsel %vm1351, %v1322, %v862
      %v1354 = vsel %vm1351, %v1323, %v864
      %v1355 = vsel %vm1351, %v1324, %v866
      %v1356 = vsel %vm1351, %v1325, %v868
      %v1357 = vsel %vm1351, %v1326, %v870
      %v1358 = vsel %vm1351, %v1327, %v872
      %v1359 = vsel %vm1351, %v1328, %v874
      %v1360 = vsel %vm1351, %v1329, %v876
      %v1361 = vsel %vm1351, %v1330, %v878
      %v1362 = vsel %vm1351, %v1331, %v880
      %v1363 = vsel %vm1351, %v1332, %v882
      %v1364 = vsel %vm1351, %v1333, %v884
      %v1365 = vsel %vm1351, %v1334, %v886
      %v1366 = vsel %vm1351, %v1335, %v888
      %v1367 = vsel %vm1351, %v1336, %v890
      %v1368 = vsel %vm1351, %v1337, %v892
      %v1369 = vsel %vm1351, %v1338, %v894
      %v1370 = vsel %vm1351, %v1339, %v896
      %v1371 = vsel %vm1351, %v1340, %v898
      %v1372 = vsel %vm1351, %v1341, %v900
      %v1373 = vsel %vm1351, %v1342, %v902
      %v1374 = vsel %vm1351, %v1343, %v904
      %v1375 = vsel %vm1351, %v1344, %v906
      %v1376 = vsel %vm1351, %v1345, %v908
      %v1377 = vsel %vm1351, %v1346, %v910
      %v1378 = vsel %vm1351, %v1347, %v912
      %v1379 = vsel %vm1351, %v1348, %v914
      %v1380 = vsel %vm1351, %v1349, %v916
      %v1381 = vsel %vm1351, %v1350, %v918
      %vm1382 = vcmask 195584
      %v1383 = vsel %vm1382, %v1352, %v953
      %v1384 = vsel %vm1382, %v1353, %v955
      %v1385 = vsel %vm1382, %v1354, %v957
      %v1386 = vsel %vm1382, %v1355, %v959
      %v1387 = vsel %vm1382, %v1356, %v961
      %v1388 = vsel %vm1382, %v1357, %v963
      %v1389 = vsel %vm1382, %v1358, %v965
      %v1390 = vsel %vm1382, %v1359, %v967
      %v1391 = vsel %vm1382, %v1360, %v969
      %v1392 = vsel %vm1382, %v1361, %v971
      %v1393 = vsel %vm1382, %v1362, %v973
      %v1394 = vsel %vm1382, %v1363, %v975
      %v1395 = vsel %vm1382, %v1364, %v977
      %v1396 = vsel %vm1382, %v1365, %v979
      %v1397 = vsel %vm1382, %v1366, %v981
      %v1398 = vsel %vm1382, %v1367, %v983
      %v1399 = vsel %vm1382, %v1368, %v985
      %v1400 = vsel %vm1382, %v1369, %v987
      %v1401 = vsel %vm1382, %v1370, %v989
      %v1402 = vsel %vm1382, %v1371, %v991
      %v1403 = vsel %vm1382, %v1372, %v993
      %v1404 = vsel %vm1382, %v1373, %v995
      %v1405 = vsel %vm1382, %v1374, %v997
      %v1406 = vsel %vm1382, %v1375, %v999
      %v1407 = vsel %vm1382, %v1376, %v1001
      %v1408 = vsel %vm1382, %v1377, %v1003
      %v1409 = vsel %vm1382, %v1378, %v1005
      %v1410 = vsel %vm1382, %v1379, %v1007
      %v1411 = vsel %vm1382, %v1380, %v1009
      %v1412 = vsel %vm1382, %v1381, %v1011
      %vm1413 = vcmask 228352
      %v1414 = vsel %vm1413, %v1383, %v1046
      %v1415 = vsel %vm1413, %v1384, %v1048
      %v1416 = vsel %vm1413, %v1385, %v1050
      %v1417 = vsel %vm1413, %v1386, %v1052
      %v1418 = vsel %vm1413, %v1387, %v1054
      %v1419 = vsel %vm1413, %v1388, %v1056
      %v1420 = vsel %vm1413, %v1389, %v1058
      %v1421 = vsel %vm1413, %v1390, %v1060
      %v1422 = vsel %vm1413, %v1391, %v1062
      %v1423 = vsel %vm1413, %v1392, %v1064
      %v1424 = vsel %vm1413, %v1393, %v1066
      %v1425 = vsel %vm1413, %v1394, %v1068
      %v1426 = vsel %vm1413, %v1395, %v1070
      %v1427 = vsel %vm1413, %v1396, %v1072
      %v1428 = vsel %vm1413, %v1397, %v1074
      %v1429 = vsel %vm1413, %v1398, %v1076
      %v1430 = vsel %vm1413, %v1399, %v1078
      %v1431 = vsel %vm1413, %v1400, %v1080
      %v1432 = vsel %vm1413, %v1401, %v1082
      %v1433 = vsel %vm1413, %v1402, %v1084
      %v1434 = vsel %vm1413, %v1403, %v1086
      %v1435 = vsel %vm1413, %v1404, %v1088
      %v1436 = vsel %vm1413, %v1405, %v1090
      %v1437 = vsel %vm1413, %v1406, %v1092
      %v1438 = vsel %vm1413, %v1407, %v1094
      %v1439 = vsel %vm1413, %v1408, %v1096
      %v1440 = vsel %vm1413, %v1409, %v1098
      %v1441 = vsel %vm1413, %v1410, %v1100
      %v1442 = vsel %vm1413, %v1411, %v1102
      %v1443 = vsel %vm1413, %v1412, %v1104
      %vm1444 = vcmask 261120
      %v1445 = vsel %vm1444, %v1414, %v1139
      %v1446 = vsel %vm1444, %v1415, %v1141
      %v1447 = vsel %vm1444, %v1416, %v1143
      %v1448 = vsel %vm1444, %v1417, %v1145
      %v1449 = vsel %vm1444, %v1418, %v1147
      %v1450 = vsel %vm1444, %v1419, %v1149
      %v1451 = vsel %vm1444, %v1420, %v1151
      %v1452 = vsel %vm1444, %v1421, %v1153
      %v1453 = vsel %vm1444, %v1422, %v1155
      %v1454 = vsel %vm1444, %v1423, %v1157
      %v1455 = vsel %vm1444, %v1424, %v1159
      %v1456 = vsel %vm1444, %v1425, %v1161
      %v1457 = vsel %vm1444, %v1426, %v1163
      %v1458 = vsel %vm1444, %v1427, %v1165
      %v1459 = vsel %vm1444, %v1428, %v1167
      %v1460 = vsel %vm1444, %v1429, %v1169
      %v1461 = vsel %vm1444, %v1430, %v1171
      %v1462 = vsel %vm1444, %v1431, %v1173
      %v1463 = vsel %vm1444, %v1432, %v1175
      %v1464 = vsel %vm1444, %v1433, %v1177
      %v1465 = vsel %vm1444, %v1434, %v1179
      %v1466 = vsel %vm1444, %v1435, %v1181
      %v1467 = vsel %vm1444, %v1436, %v1183
      %v1468 = vsel %vm1444, %v1437, %v1185
      %v1469 = vsel %vm1444, %v1438, %v1187
      %v1470 = vsel %vm1444, %v1439, %v1189
      %v1471 = vsel %vm1444, %v1440, %v1191
      %v1472 = vsel %vm1444, %v1441, %v1193
      %v1473 = vsel %vm1444, %v1442, %v1195
      %v1474 = vsel %vm1444, %v1443, %v1197
      %v1475 = vld [vmem:[%s1] sm:$0xff]
      %v1476 = vld [vmem:[%s1 + $0x8] sm:$0xff]
      %v1477 = vld [vmem:[%s1 + $0x10] sm:$0xff]
      %v1478 = vld [vmem:[%s1 + $0x18] sm:$0xff]
      %v1479 = vld [vmem:[%s1 + $0x20] sm:$0xf]
      %v1480 = vld [vmem:[%s2] sm:$0x1]
      %v1482 = vlaneseq
      %v1483 = vshrl.u32 %v1482, 7
      %v1484 = vsub.s32 0, %v1483
      %v1485 = vrot.slane %v1480, %v1484
      %vm1487 = vcmask 293888
      %v1489 = vsel %vm1487, %v1445, 0
      %v1492 = vsel %vm1487, %v1446, 0
      %v1495 = vsel %vm1487, %v1447, 0
      %v1498 = vsel %vm1487, %v1448, 0
      %v1501 = vsel %vm1487, %v1449, 0
      %v1504 = vsel %vm1487, %v1450, 0
      %v1507 = vsel %vm1487, %v1451, 0
      %v1510 = vsel %vm1487, %v1452, 0
      %v1513 = vsel %vm1487, %v1453, 0
      %v1516 = vsel %vm1487, %v1454, 0
      %v1519 = vsel %vm1487, %v1455, 0
      %v1522 = vsel %vm1487, %v1456, 0
      %v1525 = vsel %vm1487, %v1457, 0
      %v1528 = vsel %vm1487, %v1458, 0
      %v1531 = vsel %vm1487, %v1459, 0
      %v1534 = vsel %vm1487, %v1460, 0
      %v1537 = vsel %vm1487, %v1461, 0
      %v1540 = vsel %vm1487, %v1462, 0
      %v1543 = vsel %vm1487, %v1463, 0
      %v1546 = vsel %vm1487, %v1464, 0
      %v1549 = vsel %vm1487, %v1465, 0
      %v1552 = vsel %vm1487, %v1466, 0
      %v1555 = vsel %vm1487, %v1467, 0
      %v1558 = vsel %vm1487, %v1468, 0
      %v1561 = vsel %vm1487, %v1469, 0
      %v1564 = vsel %vm1487, %v1470, 0
      %v1567 = vsel %vm1487, %v1471, 0
      %v1570 = vsel %vm1487, %v1472, 0
      %v1573 = vsel %vm1487, %v1473, 0
      %v1576 = vsel %vm1487, %v1474, 0
      %vm1578 = vcmask 1043456
      %v1580 = vsel %vm1578, %v1479, 0
      %1582 = vmatprep.subr.mxu0 0.0
      %1583 = vmatpush1.msra.mxu0 0.0
      %1584 = vmatprep.subr.mxu0 0.0
      %1585 = vmatpush1.msra.mxu0 0.0
      %1586 = vmatprep.subr.mxu0 0.0
      %1587 = vmatpush1.msra.mxu0 0.0
      %1588 = vmatprep.subr.mxu0 0.0
      %1589 = vmatpush1.msra.mxu0 0.0
      %1590 = vmatprep.subr.mxu0 0.0
      %1591 = vmatpush1.msra.mxu0 0.0
      %1592 = vmatprep.subr.mxu0 0.0
      %1593 = vmatpush1.msra.mxu0 0.0
      %1594 = vmatprep.subr.mxu0 0.0
      %1595 = vmatpush1.msra.mxu0 0.0
      %1596 = vmatprep.subr.mxu0 0.0
      %1597 = vmatpush1.msra.mxu0 0.0
      %1598 = vmatprep.subr.mxu0 0.0
      %1599 = vmatpush1.msra.mxu0 0.0
      %1600 = vmatprep.subr.mxu0 0.0
      %1601 = vmatpush1.msra.mxu0 0.0
      %1602 = vmatprep.subr.mxu0 0.0
      %1603 = vmatpush1.msra.mxu0 0.0
      %1604 = vmatprep.subr.mxu0 0.0
      %1605 = vmatpush1.msra.mxu0 %v1580
      %1606 = vmatprep.subr.mxu0 0.0
      %1607 = vmatpush1.msra.mxu0 %v1478
      %1608 = vmatprep.subr.mxu0 0.0
      %1609 = vmatpush1.msra.mxu0 %v1477
      %1610 = vmatprep.subr.mxu0 0.0
      %1611 = vmatpush1.msra.mxu0 %v1476
      %1612 = vmatprep.subr.mxu0 0.0
      %1613 = vmatpush1.msra.mxu0 %v1475
      %1614 = vmatprep.subr.mxu0 0.0
      %1615 = vmatpush2.msra.mxu0 0.0
      %1616 = vmatprep.subr.mxu0 0.0
      %1617 = vmatpush2.msra.mxu0 0.0
      %1618 = vmatprep.subr.mxu0 0.0
      %1619 = vmatpush2.msra.mxu0 0.0
      %1620 = vmatprep.subr.mxu0 0.0
      %1621 = vmatpush2.msra.mxu0 0.0
      %1622 = vmatprep.subr.mxu0 0.0
      %1623 = vmatpush2.msra.mxu0 0.0
      %1624 = vmatprep.subr.mxu0 0.0
      %1625 = vmatpush2.msra.mxu0 0.0
      %1626 = vmatprep.subr.mxu0 0.0
      %1627 = vmatpush2.msra.mxu0 0.0
      %1628 = vmatprep.subr.mxu0 0.0
      %1629 = vmatpush2.msra.mxu0 0.0
      %1630 = vmatprep.subr.mxu0 0.0
      %1631 = vmatpush2.msra.mxu0 0.0
      %1632 = vmatprep.subr.mxu0 0.0
      %1633 = vmatpush2.msra.mxu0 0.0
      %1634 = vmatprep.subr.mxu0 0.0
      %1635 = vmatpush2.msra.mxu0 0.0
      %1636 = vmatprep.subr.mxu0 0.0
      %1637 = vmatpush2.msra.mxu0 0.0
      %1638 = vmatprep.subr.mxu0 0.0
      %1639 = vmatpush2.msra.mxu0 0.0
      %1640 = vmatprep.subr.mxu0 0.0
      %1641 = vmatpush2.msra.mxu0 0.0
      %1642 = vmatprep.subr.mxu0 0.0
      %1643 = vmatpush2.msra.mxu0 0.0
      %1644 = vmatprep.subr.mxu0 0.0
      %1645 = vmatpush2.msra.mxu0 0.0
      %1646 = vmatprep.mubr.f32.mxu0 0.0
      %1647 = vmatmul.mubr.f32.gmra.mxu0 %v1489
      %v1648 = vpop.f32.mrf.mxu0
      %v1649 = vadd.f32 %v1485, %v1648
      %v1650 = vpop.f32.mrf.mxu0
      %1651 = vmatprep.mubr.f32.mxu0 0.0
      %1652 = vmatmul.mubr.f32.gmra.mxu0 %v1492
      %v1653 = vpop.f32.mrf.mxu0
      %v1654 = vadd.f32 %v1485, %v1653
      %v1655 = vpop.f32.mrf.mxu0
      %1656 = vmatprep.mubr.f32.mxu0 0.0
      %1657 = vmatmul.mubr.f32.gmra.mxu0 %v1495
      %v1658 = vpop.f32.mrf.mxu0
      %v1659 = vadd.f32 %v1485, %v1658
      %v1660 = vpop.f32.mrf.mxu0
      %1661 = vmatprep.mubr.f32.mxu0 0.0
      %1662 = vmatmul.mubr.f32.gmra.mxu0 %v1498
      %v1663 = vpop.f32.mrf.mxu0
      %v1664 = vadd.f32 %v1485, %v1663
      %v1665 = vpop.f32.mrf.mxu0
      %1666 = vmatprep.mubr.f32.mxu0 0.0
      %1667 = vmatmul.mubr.f32.gmra.mxu0 %v1501
      %v1668 = vpop.f32.mrf.mxu0
      %v1669 = vadd.f32 %v1485, %v1668
      %v1670 = vpop.f32.mrf.mxu0
      %1671 = vmatprep.mubr.f32.mxu0 0.0
      %1672 = vmatmul.mubr.f32.gmra.mxu0 %v1504
      %v1673 = vpop.f32.mrf.mxu0
      %v1674 = vadd.f32 %v1485, %v1673
      %v1675 = vpop.f32.mrf.mxu0
      %1676 = vmatprep.mubr.f32.mxu0 0.0
      %1677 = vmatmul.mubr.f32.gmra.mxu0 %v1507
      %v1678 = vpop.f32.mrf.mxu0
      %v1679 = vadd.f32 %v1485, %v1678
      %v1680 = vpop.f32.mrf.mxu0
      %1681 = vmatprep.mubr.f32.mxu0 0.0
      %1682 = vmatmul.mubr.f32.gmra.mxu0 %v1510
      %v1683 = vpop.f32.mrf.mxu0
      %v1684 = vadd.f32 %v1485, %v1683
      %v1685 = vpop.f32.mrf.mxu0
      %1686 = vmatprep.mubr.f32.mxu0 0.0
      %1687 = vmatmul.mubr.f32.gmra.mxu0 %v1513
      %v1688 = vpop.f32.mrf.mxu0
      %v1689 = vadd.f32 %v1485, %v1688
      %v1690 = vpop.f32.mrf.mxu0
      %1691 = vmatprep.mubr.f32.mxu0 0.0
      %1692 = vmatmul.mubr.f32.gmra.mxu0 %v1516
      %v1693 = vpop.f32.mrf.mxu0
      %v1694 = vadd.f32 %v1485, %v1693
      %v1695 = vpop.f32.mrf.mxu0
      %1696 = vmatprep.mubr.f32.mxu0 0.0
      %1697 = vmatmul.mubr.f32.gmra.mxu0 %v1519
      %v1698 = vpop.f32.mrf.mxu0
      %v1699 = vadd.f32 %v1485, %v1698
      %v1700 = vpop.f32.mrf.mxu0
      %1701 = vmatprep.mubr.f32.mxu0 0.0
      %1702 = vmatmul.mubr.f32.gmra.mxu0 %v1522
      %v1703 = vpop.f32.mrf.mxu0
      %v1704 = vadd.f32 %v1485, %v1703
      %v1705 = vpop.f32.mrf.mxu0
      %1706 = vmatprep.mubr.f32.mxu0 0.0
      %1707 = vmatmul.mubr.f32.gmra.mxu0 %v1525
      %v1708 = vpop.f32.mrf.mxu0
      %v1709 = vadd.f32 %v1485, %v1708
      %v1710 = vpop.f32.mrf.mxu0
      %1711 = vmatprep.mubr.f32.mxu0 0.0
      %1712 = vmatmul.mubr.f32.gmra.mxu0 %v1528
      %v1713 = vpop.f32.mrf.mxu0
      %v1714 = vadd.f32 %v1485, %v1713
      %v1715 = vpop.f32.mrf.mxu0
      %1716 = vmatprep.mubr.f32.mxu0 0.0
      %1717 = vmatmul.mubr.f32.gmra.mxu0 %v1531
      %v1718 = vpop.f32.mrf.mxu0
      %v1719 = vadd.f32 %v1485, %v1718
      %v1720 = vpop.f32.mrf.mxu0
      %1721 = vmatprep.mubr.f32.mxu0 0.0
      %1722 = vmatmul.mubr.f32.gmra.mxu0 %v1534
      %v1723 = vpop.f32.mrf.mxu0
      %v1724 = vadd.f32 %v1485, %v1723
      %v1725 = vpop.f32.mrf.mxu0
      %1726 = vmatprep.mubr.f32.mxu0 0.0
      %1727 = vmatmul.mubr.f32.gmra.mxu0 %v1537
      %v1728 = vpop.f32.mrf.mxu0
      %v1729 = vadd.f32 %v1485, %v1728
      %v1730 = vpop.f32.mrf.mxu0
      %1731 = vmatprep.mubr.f32.mxu0 0.0
      %1732 = vmatmul.mubr.f32.gmra.mxu0 %v1540
      %v1733 = vpop.f32.mrf.mxu0
      %v1734 = vadd.f32 %v1485, %v1733
      %v1735 = vpop.f32.mrf.mxu0
      %1736 = vmatprep.mubr.f32.mxu0 0.0
      %1737 = vmatmul.mubr.f32.gmra.mxu0 %v1543
      %v1738 = vpop.f32.mrf.mxu0
      %v1739 = vadd.f32 %v1485, %v1738
      %v1740 = vpop.f32.mrf.mxu0
      %1741 = vmatprep.mubr.f32.mxu0 0.0
      %1742 = vmatmul.mubr.f32.gmra.mxu0 %v1546
      %v1743 = vpop.f32.mrf.mxu0
      %v1744 = vadd.f32 %v1485, %v1743
      %v1745 = vpop.f32.mrf.mxu0
      %1746 = vmatprep.mubr.f32.mxu0 0.0
      %1747 = vmatmul.mubr.f32.gmra.mxu0 %v1549
      %v1748 = vpop.f32.mrf.mxu0
      %v1749 = vadd.f32 %v1485, %v1748
      %v1750 = vpop.f32.mrf.mxu0
      %1751 = vmatprep.mubr.f32.mxu0 0.0
      %1752 = vmatmul.mubr.f32.gmra.mxu0 %v1552
      %v1753 = vpop.f32.mrf.mxu0
      %v1754 = vadd.f32 %v1485, %v1753
      %v1755 = vpop.f32.mrf.mxu0
      %1756 = vmatprep.mubr.f32.mxu0 0.0
      %1757 = vmatmul.mubr.f32.gmra.mxu0 %v1555
      %v1758 = vpop.f32.mrf.mxu0
      %v1759 = vadd.f32 %v1485, %v1758
      %v1760 = vpop.f32.mrf.mxu0
      %1761 = vmatprep.mubr.f32.mxu0 0.0
      %1762 = vmatmul.mubr.f32.gmra.mxu0 %v1558
      %v1763 = vpop.f32.mrf.mxu0
      %v1764 = vadd.f32 %v1485, %v1763
      %v1765 = vpop.f32.mrf.mxu0
      %1766 = vmatprep.mubr.f32.mxu0 0.0
      %1767 = vmatmul.mubr.f32.gmra.mxu0 %v1561
      %v1768 = vpop.f32.mrf.mxu0
      %v1769 = vadd.f32 %v1485, %v1768
      %v1770 = vpop.f32.mrf.mxu0
      %1771 = vmatprep.mubr.f32.mxu0 0.0
      %1772 = vmatmul.mubr.f32.gmra.mxu0 %v1564
      %v1773 = vpop.f32.mrf.mxu0
      %v1774 = vadd.f32 %v1485, %v1773
      %v1775 = vpop.f32.mrf.mxu0
      %1776 = vmatprep.mubr.f32.mxu0 0.0
      %1777 = vmatmul.mubr.f32.gmra.mxu0 %v1567
      %v1778 = vpop.f32.mrf.mxu0
      %v1779 = vadd.f32 %v1485, %v1778
      %v1780 = vpop.f32.mrf.mxu0
      %1781 = vmatprep.mubr.f32.mxu0 0.0
      %1782 = vmatmul.mubr.f32.gmra.mxu0 %v1570
      %v1783 = vpop.f32.mrf.mxu0
      %v1784 = vadd.f32 %v1485, %v1783
      %v1785 = vpop.f32.mrf.mxu0
      %1786 = vmatprep.mubr.f32.mxu0 0.0
      %1787 = vmatmul.mubr.f32.gmra.mxu0 %v1573
      %v1788 = vpop.f32.mrf.mxu0
      %v1789 = vadd.f32 %v1485, %v1788
      %v1790 = vpop.f32.mrf.mxu0
      %1791 = vmatprep.mubr.f32.mxu0 0.0
      %1792 = vmatmul.mubr.f32.gmra.mxu0 %v1576
      %v1793 = vpop.f32.mrf.mxu0
      %v1794 = vadd.f32 %v1485, %v1793
      %v1795 = vpop.f32.mrf.mxu0
      %1796 = vdwg.mxu0
      %v1797 = vmax.f32 %v1649, 0.0
      %v1798 = vmax.f32 %v1654, 0.0
      %v1799 = vmax.f32 %v1659, 0.0
      %v1800 = vmax.f32 %v1664, 0.0
      %v1801 = vmax.f32 %v1669, 0.0
      %v1802 = vmax.f32 %v1674, 0.0
      %v1803 = vmax.f32 %v1679, 0.0
      %v1804 = vmax.f32 %v1684, 0.0
      %v1805 = vmax.f32 %v1689, 0.0
      %v1806 = vmax.f32 %v1694, 0.0
      %v1807 = vmax.f32 %v1699, 0.0
      %v1808 = vmax.f32 %v1704, 0.0
      %v1809 = vmax.f32 %v1709, 0.0
      %v1810 = vmax.f32 %v1714, 0.0
      %v1811 = vmax.f32 %v1719, 0.0
      %v1812 = vmax.f32 %v1724, 0.0
      %v1813 = vmax.f32 %v1729, 0.0
      %v1814 = vmax.f32 %v1734, 0.0
      %v1815 = vmax.f32 %v1739, 0.0
      %v1816 = vmax.f32 %v1744, 0.0
      %v1817 = vmax.f32 %v1749, 0.0
      %v1818 = vmax.f32 %v1754, 0.0
      %v1819 = vmax.f32 %v1759, 0.0
      %v1820 = vmax.f32 %v1764, 0.0
      %v1821 = vmax.f32 %v1769, 0.0
      %v1822 = vmax.f32 %v1774, 0.0
      %v1823 = vmax.f32 %v1779, 0.0
      %v1824 = vmax.f32 %v1784, 0.0
      %v1825 = vmax.f32 %v1789, 0.0
      %v1826 = vmax.f32 %v1794, 0.0
      %v1827 = vld [vmem:[%s5] sm:$0xff]
      %v1828 = vld [vmem:[%s5 + $0x8] sm:$0xff]
      %v1829 = vld [vmem:[%s5 + $0x10] sm:$0xff]
      %v1830 = vld [vmem:[%s5 + $0x18] sm:$0xff]
      %v1831 = vld [vmem:[%s5 + $0x20] sm:$0xff]
      %v1832 = vld [vmem:[%s5 + $0x28] sm:$0xff]
      %v1833 = vld [vmem:[%s5 + $0x30] sm:$0xff]
      %v1834 = vld [vmem:[%s5 + $0x38] sm:$0xff]
      %v1835 = vld [vmem:[%s5 + $0x40] sm:$0xff]
      %v1836 = vld [vmem:[%s5 + $0x48] sm:$0xff]
      %v1837 = vld [vmem:[%s5 + $0x50] sm:$0xff]
      %v1838 = vld [vmem:[%s5 + $0x58] sm:$0xff]
      %v1839 = vld [vmem:[%s5 + $0x60] sm:$0xff]
      %v1840 = vld [vmem:[%s5 + $0x68] sm:$0xff]
      %v1841 = vld [vmem:[%s5 + $0x70] sm:$0xff]
      %v1842 = vld [vmem:[%s5 + $0x78] sm:$0xff]
      %v1843 = vld [vmem:[%s5 + $0x80] sm:$0xff]
      %v1844 = vld [vmem:[%s5 + $0x88] sm:$0xff]
      %v1845 = vld [vmem:[%s5 + $0x90] sm:$0xff]
      %v1846 = vld [vmem:[%s5 + $0x98] sm:$0xff]
      %v1847 = vld [vmem:[%s5 + $0xa0] sm:$0xff]
      %v1848 = vld [vmem:[%s5 + $0xa8] sm:$0xff]
      %v1849 = vld [vmem:[%s5 + $0xb0] sm:$0xff]
      %v1850 = vld [vmem:[%s5 + $0xb8] sm:$0xff]
      %v1851 = vld [vmem:[%s5 + $0xc0] sm:$0xff]
      %v1852 = vld [vmem:[%s5 + $0xc8] sm:$0xff]
      %v1853 = vld [vmem:[%s5 + $0xd0] sm:$0xff]
      %v1854 = vld [vmem:[%s5 + $0xd8] sm:$0xff]
      %v1855 = vld [vmem:[%s5 + $0xe0] sm:$0xff]
      %v1856 = vld [vmem:[%s5 + $0xe8] sm:$0xff]
      %1858 = vset.pattern.permute.xlu0 0
      %1859 = vperm.xlu0 %1858, %v1827
      %v1860 = vpop.permute.xlu0 %1859
      %1863 = vset.pattern.permute.xlu0 0
      %1864 = vperm.xlu0 %1863, %v1828
      %v1865 = vpop.permute.xlu0 %1864
      %1868 = vset.pattern.permute.xlu0 0
      %1869 = vperm.xlu0 %1868, %v1829
      %v1870 = vpop.permute.xlu0 %1869
      %1873 = vset.pattern.permute.xlu0 0
      %1874 = vperm.xlu0 %1873, %v1830
      %v1875 = vpop.permute.xlu0 %1874
      %1878 = vset.pattern.permute.xlu0 0
      %1879 = vperm.xlu0 %1878, %v1831
      %v1880 = vpop.permute.xlu0 %1879
      %1883 = vset.pattern.permute.xlu0 0
      %1884 = vperm.xlu0 %1883, %v1832
      %v1885 = vpop.permute.xlu0 %1884
      %1888 = vset.pattern.permute.xlu0 0
      %1889 = vperm.xlu0 %1888, %v1833
      %v1890 = vpop.permute.xlu0 %1889
      %1893 = vset.pattern.permute.xlu0 0
      %1894 = vperm.xlu0 %1893, %v1834
      %v1895 = vpop.permute.xlu0 %1894
      %1898 = vset.pattern.permute.xlu0 0
      %1899 = vperm.xlu0 %1898, %v1835
      %v1900 = vpop.permute.xlu0 %1899
      %1903 = vset.pattern.permute.xlu0 0
      %1904 = vperm.xlu0 %1903, %v1836
      %v1905 = vpop.permute.xlu0 %1904
      %1908 = vset.pattern.permute.xlu0 0
      %1909 = vperm.xlu0 %1908, %v1837
      %v1910 = vpop.permute.xlu0 %1909
      %1913 = vset.pattern.permute.xlu0 0
      %1914 = vperm.xlu0 %1913, %v1838
      %v1915 = vpop.permute.xlu0 %1914
      %1918 = vset.pattern.permute.xlu0 0
      %1919 = vperm.xlu0 %1918, %v1839
      %v1920 = vpop.permute.xlu0 %1919
      %1923 = vset.pattern.permute.xlu0 0
      %1924 = vperm.xlu0 %1923, %v1840
      %v1925 = vpop.permute.xlu0 %1924
      %1928 = vset.pattern.permute.xlu0 0
      %1929 = vperm.xlu0 %1928, %v1841
      %v1930 = vpop.permute.xlu0 %1929
      %1933 = vset.pattern.permute.xlu0 0
      %1934 = vperm.xlu0 %1933, %v1842
      %v1935 = vpop.permute.xlu0 %1934
      %1938 = vset.pattern.permute.xlu0 0
      %1939 = vperm.xlu0 %1938, %v1843
      %v1940 = vpop.permute.xlu0 %1939
      %1943 = vset.pattern.permute.xlu0 0
      %1944 = vperm.xlu0 %1943, %v1844
      %v1945 = vpop.permute.xlu0 %1944
      %1948 = vset.pattern.permute.xlu0 0
      %1949 = vperm.xlu0 %1948, %v1845
      %v1950 = vpop.permute.xlu0 %1949
      %1953 = vset.pattern.permute.xlu0 0
      %1954 = vperm.xlu0 %1953, %v1846
      %v1955 = vpop.permute.xlu0 %1954
      %1958 = vset.pattern.permute.xlu0 0
      %1959 = vperm.xlu0 %1958, %v1847
      %v1960 = vpop.permute.xlu0 %1959
      %1963 = vset.pattern.permute.xlu0 0
      %1964 = vperm.xlu0 %1963, %v1848
      %v1965 = vpop.permute.xlu0 %1964
      %1968 = vset.pattern.permute.xlu0 0
      %1969 = vperm.xlu0 %1968, %v1849
      %v1970 = vpop.permute.xlu0 %1969
      %1973 = vset.pattern.permute.xlu0 0
      %1974 = vperm.xlu0 %1973, %v1850
      %v1975 = vpop.permute.xlu0 %1974
      %1978 = vset.pattern.permute.xlu0 0
      %1979 = vperm.xlu0 %1978, %v1851
      %v1980 = vpop.permute.xlu0 %1979
      %1983 = vset.pattern.permute.xlu0 0
      %1984 = vperm.xlu0 %1983, %v1852
      %v1985 = vpop.permute.xlu0 %1984
      %1988 = vset.pattern.permute.xlu0 0
      %1989 = vperm.xlu0 %1988, %v1853
      %v1990 = vpop.permute.xlu0 %1989
      %1993 = vset.pattern.permute.xlu0 0
      %1994 = vperm.xlu0 %1993, %v1854
      %v1995 = vpop.permute.xlu0 %1994
      %1998 = vset.pattern.permute.xlu0 0
      %1999 = vperm.xlu0 %1998, %v1855
      %v2000 = vpop.permute.xlu0 %1999
      %2003 = vset.pattern.permute.xlu0 0
      %2004 = vperm.xlu0 %2003, %v1856
      %v2005 = vpop.permute.xlu0 %2004
      %v2007 = vmul.f32 %v1797, %v1860
      %v2008 = vmul.f32 %v1798, %v1865
      %v2009 = vmul.f32 %v1799, %v1870
      %v2010 = vmul.f32 %v1800, %v1875
      %v2011 = vmul.f32 %v1801, %v1880
      %v2012 = vmul.f32 %v1802, %v1885
      %v2013 = vmul.f32 %v1803, %v1890
      %v2014 = vmul.f32 %v1804, %v1895
      %v2015 = vmul.f32 %v1805, %v1900
      %v2016 = vmul.f32 %v1806, %v1905
      %v2017 = vmul.f32 %v1807, %v1910
      %v2018 = vmul.f32 %v1808, %v1915
      %v2019 = vmul.f32 %v1809, %v1920
      %v2020 = vmul.f32 %v1810, %v1925
      %v2021 = vmul.f32 %v1811, %v1930
      %v2022 = vmul.f32 %v1812, %v1935
      %v2023 = vmul.f32 %v1813, %v1940
      %v2024 = vmul.f32 %v1814, %v1945
      %v2025 = vmul.f32 %v1815, %v1950
      %v2026 = vmul.f32 %v1816, %v1955
      %v2027 = vmul.f32 %v1817, %v1960
      %v2028 = vmul.f32 %v1818, %v1965
      %v2029 = vmul.f32 %v1819, %v1970
      %v2030 = vmul.f32 %v1820, %v1975
      %v2031 = vmul.f32 %v1821, %v1980
      %v2032 = vmul.f32 %v1822, %v1985
      %v2033 = vmul.f32 %v1823, %v1990
      %v2034 = vmul.f32 %v1824, %v1995
      %v2035 = vmul.f32 %v1825, %v2000
      %v2036 = vmul.f32 %v1826, %v2005
      %2037 = vst.msk [vmem:[#allocation2 + $0x1] sm:$0xff] %vm290, %v2007
      %2038 = vst.msk [vmem:[#allocation2 + $0x9] sm:$0xff] %vm290, %v2008
      %2039 = vst.msk [vmem:[#allocation2 + $0x11] sm:$0xff] %vm290, %v2009
      %2040 = vst.msk [vmem:[#allocation2 + $0x19] sm:$0xff] %vm290, %v2010
      %2041 = vst.msk [vmem:[#allocation2 + $0x21] sm:$0xff] %vm290, %v2011
      %2042 = vst.msk [vmem:[#allocation2 + $0x29] sm:$0xff] %vm290, %v2012
      %2043 = vst.msk [vmem:[#allocation2 + $0x31] sm:$0xff] %vm290, %v2013
      %2044 = vst.msk [vmem:[#allocation2 + $0x39] sm:$0xff] %vm290, %v2014
      %2045 = vst.msk [vmem:[#allocation2 + $0x41] sm:$0xff] %vm290, %v2015
      %2046 = vst.msk [vmem:[#allocation2 + $0x49] sm:$0xff] %vm290, %v2016
      %2047 = vst.msk [vmem:[#allocation2 + $0x51] sm:$0xff] %vm290, %v2017
      %2048 = vst.msk [vmem:[#allocation2 + $0x59] sm:$0xff] %vm290, %v2018
      %2049 = vst.msk [vmem:[#allocation2 + $0x61] sm:$0xff] %vm290, %v2019
      %2050 = vst.msk [vmem:[#allocation2 + $0x69] sm:$0xff] %vm290, %v2020
      %2051 = vst.msk [vmem:[#allocation2 + $0x71] sm:$0xff] %vm290, %v2021
      %2052 = vst.msk [vmem:[#allocation2 + $0x79] sm:$0xff] %vm290, %v2022
      %2053 = vst.msk [vmem:[#allocation2 + $0x81] sm:$0xff] %vm290, %v2023
      %2054 = vst.msk [vmem:[#allocation2 + $0x89] sm:$0xff] %vm290, %v2024
      %2055 = vst.msk [vmem:[#allocation2 + $0x91] sm:$0xff] %vm290, %v2025
      %2056 = vst.msk [vmem:[#allocation2 + $0x99] sm:$0xff] %vm290, %v2026
      %2057 = vst.msk [vmem:[#allocation2 + $0xa1] sm:$0xff] %vm290, %v2027
      %2058 = vst.msk [vmem:[#allocation2 + $0xa9] sm:$0xff] %vm290, %v2028
      %2059 = vst.msk [vmem:[#allocation2 + $0xb1] sm:$0xff] %vm290, %v2029
      %2060 = vst.msk [vmem:[#allocation2 + $0xb9] sm:$0xff] %vm290, %v2030
      %2061 = vst.msk [vmem:[#allocation2 + $0xc1] sm:$0xff] %vm290, %v2031
      %2062 = vst.msk [vmem:[#allocation2 + $0xc9] sm:$0xff] %vm290, %v2032
      %2063 = vst.msk [vmem:[#allocation2 + $0xd1] sm:$0xff] %vm290, %v2033
      %2064 = vst.msk [vmem:[#allocation2 + $0xd9] sm:$0xff] %vm290, %v2034
      %2065 = vst.msk [vmem:[#allocation2 + $0xe1] sm:$0xff] %vm290, %v2035
      %2066 = vst.msk [vmem:[#allocation2 + $0xe9] sm:$0xff] %vm290, %v2036
      %p2067 = scmp.eq.s32.totalorder %s22, 0
      // Predicated region
      $region45: #{tpu_custom_call.1} parent=43 // pred_check
        %p2068 = pneg %p2067
      $region46: #{tpu_custom_call.1} parent=43 // pred_check_branch
        %2070 = sbr.rel (%p2068) target = $region48
      $region47: #{tpu_custom_call.1} parent=43 // pred_region
        %2071 = vst.msk [vmem:[#allocation2] sm:$0xff] %vm290, 0.0
        %2072 = vst.msk [vmem:[#allocation2 + $0x8] sm:$0xff] %vm290, 0.0
        %2073 = vst.msk [vmem:[#allocation2 + $0x10] sm:$0xff] %vm290, 0.0
        %2074 = vst.msk [vmem:[#allocation2 + $0x18] sm:$0x1] %vm288, 0.0
      $region48: #{tpu_custom_call.1} parent=43 // pred_fallthru
        _
      %p2075 = scmp.eq.s32.totalorder %s22, 1
      // Predicated region
      $region49: #{tpu_custom_call.1} parent=43 // pred_check
        %p2076 = pneg %p2075
      $region50: #{tpu_custom_call.1} parent=43 // pred_check_branch
        %2078 = sbr.rel (%p2076) target = $region52
      $region51: #{tpu_custom_call.1} parent=43 // pred_region
        %2079 = vst.msk [vmem:[#allocation2 + $0xd8] sm:$0xff] %vm290, 0.0
        %2080 = vst.msk [vmem:[#allocation2 + $0xe0] sm:$0xff] %vm290, 0.0
        %2081 = vst.msk [vmem:[#allocation2 + $0xe8] sm:$0xff] %vm290, 0.0
        %2082 = vst.msk [vmem:[#allocation2 + $0xf0] sm:$0xff] %vm290, 0.0
        %2083 = vst.msk [vmem:[#allocation2 + $0xf8] sm:$0xff] %vm290, 0.0
        %2084 = vst.msk [vmem:[#allocation2 + $0x100] sm:$0xff] %vm290, 0.0
      $region52: #{tpu_custom_call.1} parent=43 // pred_fallthru
        _
      %v2085 = vld [vmem:[#allocation2] sm:$0xff]
      %v2086 = vld [vmem:[#allocation2 + $0x8] sm:$0xff]
      %v2087 = vld [vmem:[#allocation2 + $0x10] sm:$0xff]
      %v2088 = vld [vmem:[#allocation2 + $0x18] sm:$0xff]
      %v2089 = vld [vmem:[#allocation2 + $0x20] sm:$0xff]
      %v2090 = vld [vmem:[#allocation2 + $0x28] sm:$0xff]
      %v2091 = vld [vmem:[#allocation2 + $0x30] sm:$0xff]
      %v2092 = vld [vmem:[#allocation2 + $0x38] sm:$0xff]
      %v2093 = vld [vmem:[#allocation2 + $0x40] sm:$0xff]
      %v2094 = vld [vmem:[#allocation2 + $0x48] sm:$0xff]
      %v2095 = vld [vmem:[#allocation2 + $0x50] sm:$0xff]
      %v2096 = vld [vmem:[#allocation2 + $0x58] sm:$0xff]
      %v2097 = vld [vmem:[#allocation2 + $0x60] sm:$0xff]
      %v2098 = vld [vmem:[#allocation2 + $0x68] sm:$0xff]
      %v2099 = vld [vmem:[#allocation2 + $0x70] sm:$0xff]
      %v2100 = vld [vmem:[#allocation2 + $0x78] sm:$0xff]
      %v2101 = vld [vmem:[#allocation2 + $0x80] sm:$0xff]
      %v2102 = vld [vmem:[#allocation2 + $0x88] sm:$0xff]
      %v2103 = vld [vmem:[#allocation2 + $0x90] sm:$0xff]
      %v2104 = vld [vmem:[#allocation2 + $0x98] sm:$0xff]
      %v2105 = vld [vmem:[#allocation2 + $0xa0] sm:$0xff]
      %v2106 = vld [vmem:[#allocation2 + $0xa8] sm:$0xff]
      %v2107 = vld [vmem:[#allocation2 + $0xb0] sm:$0xff]
      %v2108 = vld [vmem:[#allocation2 + $0xb8] sm:$0xff]
      %v2109 = vld [vmem:[#allocation2 + $0x1] sm:$0xff]
      %v2110 = vld [vmem:[#allocation2 + $0x9] sm:$0xff]
      %v2111 = vld [vmem:[#allocation2 + $0x11] sm:$0xff]
      %v2112 = vld [vmem:[#allocation2 + $0x19] sm:$0xff]
      %v2113 = vld [vmem:[#allocation2 + $0x21] sm:$0xff]
      %v2114 = vld [vmem:[#allocation2 + $0x29] sm:$0xff]
      %v2115 = vld [vmem:[#allocation2 + $0x31] sm:$0xff]
      %v2116 = vld [vmem:[#allocation2 + $0x39] sm:$0xff]
      %v2117 = vld [vmem:[#allocation2 + $0x41] sm:$0xff]
      %v2118 = vld [vmem:[#allocation2 + $0x49] sm:$0xff]
      %v2119 = vld [vmem:[#allocation2 + $0x51] sm:$0xff]
      %v2120 = vld [vmem:[#allocation2 + $0x59] sm:$0xff]
      %v2121 = vld [vmem:[#allocation2 + $0x61] sm:$0xff]
      %v2122 = vld [vmem:[#allocation2 + $0x69] sm:$0xff]
      %v2123 = vld [vmem:[#allocation2 + $0x71] sm:$0xff]
      %v2124 = vld [vmem:[#allocation2 + $0x79] sm:$0xff]
      %v2125 = vld [vmem:[#allocation2 + $0x81] sm:$0xff]
      %v2126 = vld [vmem:[#allocation2 + $0x89] sm:$0xff]
      %v2127 = vld [vmem:[#allocation2 + $0x91] sm:$0xff]
      %v2128 = vld [vmem:[#allocation2 + $0x99] sm:$0xff]
      %v2129 = vld [vmem:[#allocation2 + $0xa1] sm:$0xff]
      %v2130 = vld [vmem:[#allocation2 + $0xa9] sm:$0xff]
      %v2131 = vld [vmem:[#allocation2 + $0xb1] sm:$0xff]
      %v2132 = vld [vmem:[#allocation2 + $0xb9] sm:$0xff]
      %v2133 = vld [vmem:[#allocation2 + $0x2] sm:$0xff]
      %v2134 = vld [vmem:[#allocation2 + $0xa] sm:$0xff]
      %v2135 = vld [vmem:[#allocation2 + $0x12] sm:$0xff]
      %v2136 = vld [vmem:[#allocation2 + $0x1a] sm:$0xff]
      %v2137 = vld [vmem:[#allocation2 + $0x22] sm:$0xff]
      %v2138 = vld [vmem:[#allocation2 + $0x2a] sm:$0xff]
      %v2139 = vld [vmem:[#allocation2 + $0x32] sm:$0xff]
      %v2140 = vld [vmem:[#allocation2 + $0x3a] sm:$0xff]
      %v2141 = vld [vmem:[#allocation2 + $0x42] sm:$0xff]
      %v2142 = vld [vmem:[#allocation2 + $0x4a] sm:$0xff]
      %v2143 = vld [vmem:[#allocation2 + $0x52] sm:$0xff]
      %v2144 = vld [vmem:[#allocation2 + $0x5a] sm:$0xff]
      %v2145 = vld [vmem:[#allocation2 + $0x62] sm:$0xff]
      %v2146 = vld [vmem:[#allocation2 + $0x6a] sm:$0xff]
      %v2147 = vld [vmem:[#allocation2 + $0x72] sm:$0xff]
      %v2148 = vld [vmem:[#allocation2 + $0x7a] sm:$0xff]
      %v2149 = vld [vmem:[#allocation2 + $0x82] sm:$0xff]
      %v2150 = vld [vmem:[#allocation2 + $0x8a] sm:$0xff]
      %v2151 = vld [vmem:[#allocation2 + $0x92] sm:$0xff]
      %v2152 = vld [vmem:[#allocation2 + $0x9a] sm:$0xff]
      %v2153 = vld [vmem:[#allocation2 + $0xa2] sm:$0xff]
      %v2154 = vld [vmem:[#allocation2 + $0xaa] sm:$0xff]
      %v2155 = vld [vmem:[#allocation2 + $0xb2] sm:$0xff]
      %v2156 = vld [vmem:[#allocation2 + $0xba] sm:$0xff]
      %v2157 = vld [vmem:[#allocation2 + $0xc0] sm:$0xff]
      %v2158 = vld [vmem:[#allocation2 + $0xc8] sm:$0xff]
      %v2159 = vld [vmem:[#allocation2 + $0xd0] sm:$0xff]
      %v2160 = vld [vmem:[#allocation2 + $0xc1] sm:$0xff]
      %v2161 = vld [vmem:[#allocation2 + $0xc9] sm:$0xff]
      %v2162 = vld [vmem:[#allocation2 + $0xd1] sm:$0xff]
      %v2163 = vld [vmem:[#allocation2 + $0xc2] sm:$0xff]
      %v2164 = vld [vmem:[#allocation2 + $0xca] sm:$0xff]
      %v2165 = vld [vmem:[#allocation2 + $0xd2] sm:$0xff]
      %v2166 = vld [vmem:[#allocation2 + $0xd8] sm:$0xff]
      %v2167 = vld [vmem:[#allocation2 + $0xe0] sm:$0xff]
      %v2168 = vld [vmem:[#allocation2 + $0xe8] sm:$0xff]
      %v2169 = vld [vmem:[#allocation2 + $0xd9] sm:$0xff]
      %v2170 = vld [vmem:[#allocation2 + $0xe1] sm:$0xff]
      %v2171 = vld [vmem:[#allocation2 + $0xe9] sm:$0xff]
      %v2172 = vld [vmem:[#allocation2 + $0xda] sm:$0xff]
      %v2173 = vld [vmem:[#allocation2 + $0xe2] sm:$0xff]
      %v2174 = vld [vmem:[#allocation2 + $0xea] sm:$0xff]
      %2199 = vrot.lane.b32.xlu0 %v2109, 4
      %v2200 = vpop.permute.xlu0 %2199
      %2201 = vrot.lane.b32.xlu0 %v2110, 4
      %v2202 = vpop.permute.xlu0 %2201
      %2203 = vrot.lane.b32.xlu0 %v2111, 4
      %v2204 = vpop.permute.xlu0 %2203
      %2205 = vrot.lane.b32.xlu0 %v2112, 4
      %v2206 = vpop.permute.xlu0 %2205
      %2207 = vrot.lane.b32.xlu0 %v2113, 4
      %v2208 = vpop.permute.xlu0 %2207
      %2209 = vrot.lane.b32.xlu0 %v2114, 4
      %v2210 = vpop.permute.xlu0 %2209
      %2211 = vrot.lane.b32.xlu0 %v2115, 4
      %v2212 = vpop.permute.xlu0 %2211
      %2213 = vrot.lane.b32.xlu0 %v2116, 4
      %v2214 = vpop.permute.xlu0 %2213
      %2215 = vrot.lane.b32.xlu0 %v2117, 4
      %v2216 = vpop.permute.xlu0 %2215
      %2217 = vrot.lane.b32.xlu0 %v2118, 4
      %v2218 = vpop.permute.xlu0 %2217
      %2219 = vrot.lane.b32.xlu0 %v2119, 4
      %v2220 = vpop.permute.xlu0 %2219
      %2221 = vrot.lane.b32.xlu0 %v2120, 4
      %v2222 = vpop.permute.xlu0 %2221
      %2223 = vrot.lane.b32.xlu0 %v2121, 4
      %v2224 = vpop.permute.xlu0 %2223
      %2225 = vrot.lane.b32.xlu0 %v2122, 4
      %v2226 = vpop.permute.xlu0 %2225
      %2227 = vrot.lane.b32.xlu0 %v2123, 4
      %v2228 = vpop.permute.xlu0 %2227
      %2229 = vrot.lane.b32.xlu0 %v2124, 4
      %v2230 = vpop.permute.xlu0 %2229
      %2231 = vrot.lane.b32.xlu0 %v2125, 4
      %v2232 = vpop.permute.xlu0 %2231
      %2233 = vrot.lane.b32.xlu0 %v2126, 4
      %v2234 = vpop.permute.xlu0 %2233
      %2235 = vrot.lane.b32.xlu0 %v2127, 4
      %v2236 = vpop.permute.xlu0 %2235
      %2237 = vrot.lane.b32.xlu0 %v2128, 4
      %v2238 = vpop.permute.xlu0 %2237
      %2239 = vrot.lane.b32.xlu0 %v2129, 4
      %v2240 = vpop.permute.xlu0 %2239
      %2241 = vrot.lane.b32.xlu0 %v2130, 4
      %v2242 = vpop.permute.xlu0 %2241
      %2243 = vrot.lane.b32.xlu0 %v2131, 4
      %v2244 = vpop.permute.xlu0 %2243
      %2245 = vrot.lane.b32.xlu0 %v2132, 4
      %v2246 = vpop.permute.xlu0 %2245
      %2295 = vrot.lane.b32.xlu0 %v2133, 8
      %v2296 = vpop.permute.xlu0 %2295
      %2297 = vrot.lane.b32.xlu0 %v2134, 8
      %v2298 = vpop.permute.xlu0 %2297
      %2299 = vrot.lane.b32.xlu0 %v2135, 8
      %v2300 = vpop.permute.xlu0 %2299
      %2301 = vrot.lane.b32.xlu0 %v2136, 8
      %v2302 = vpop.permute.xlu0 %2301
      %2303 = vrot.lane.b32.xlu0 %v2137, 8
      %v2304 = vpop.permute.xlu0 %2303
      %2305 = vrot.lane.b32.xlu0 %v2138, 8
      %v2306 = vpop.permute.xlu0 %2305
      %2307 = vrot.lane.b32.xlu0 %v2139, 8
      %v2308 = vpop.permute.xlu0 %2307
      %2309 = vrot.lane.b32.xlu0 %v2140, 8
      %v2310 = vpop.permute.xlu0 %2309
      %2311 = vrot.lane.b32.xlu0 %v2141, 8
      %v2312 = vpop.permute.xlu0 %2311
      %2313 = vrot.lane.b32.xlu0 %v2142, 8
      %v2314 = vpop.permute.xlu0 %2313
      %2315 = vrot.lane.b32.xlu0 %v2143, 8
      %v2316 = vpop.permute.xlu0 %2315
      %2317 = vrot.lane.b32.xlu0 %v2144, 8
      %v2318 = vpop.permute.xlu0 %2317
      %2319 = vrot.lane.b32.xlu0 %v2145, 8
      %v2320 = vpop.permute.xlu0 %2319
      %2321 = vrot.lane.b32.xlu0 %v2146, 8
      %v2322 = vpop.permute.xlu0 %2321
      %2323 = vrot.lane.b32.xlu0 %v2147, 8
      %v2324 = vpop.permute.xlu0 %2323
      %2325 = vrot.lane.b32.xlu0 %v2148, 8
      %v2326 = vpop.permute.xlu0 %2325
      %2327 = vrot.lane.b32.xlu0 %v2149, 8
      %v2328 = vpop.permute.xlu0 %2327
      %2329 = vrot.lane.b32.xlu0 %v2150, 8
      %v2330 = vpop.permute.xlu0 %2329
      %2331 = vrot.lane.b32.xlu0 %v2151, 8
      %v2332 = vpop.permute.xlu0 %2331
      %2333 = vrot.lane.b32.xlu0 %v2152, 8
      %v2334 = vpop.permute.xlu0 %2333
      %2335 = vrot.lane.b32.xlu0 %v2153, 8
      %v2336 = vpop.permute.xlu0 %2335
      %2337 = vrot.lane.b32.xlu0 %v2154, 8
      %v2338 = vpop.permute.xlu0 %2337
      %2339 = vrot.lane.b32.xlu0 %v2155, 8
      %v2340 = vpop.permute.xlu0 %2339
      %2341 = vrot.lane.b32.xlu0 %v2156, 8
      %v2342 = vpop.permute.xlu0 %2341
      %2391 = vrot.lane.b32.xlu0 %v2088, 12
      %v2392 = vpop.permute.xlu0 %2391
      %2393 = vrot.lane.b32.xlu0 %v2089, 12
      %v2394 = vpop.permute.xlu0 %2393
      %2395 = vrot.lane.b32.xlu0 %v2090, 12
      %v2396 = vpop.permute.xlu0 %2395
      %2397 = vrot.lane.b32.xlu0 %v2091, 12
      %v2398 = vpop.permute.xlu0 %2397
      %2399 = vrot.lane.b32.xlu0 %v2092, 12
      %v2400 = vpop.permute.xlu0 %2399
      %2401 = vrot.lane.b32.xlu0 %v2093, 12
      %v2402 = vpop.permute.xlu0 %2401
      %2403 = vrot.lane.b32.xlu0 %v2094, 12
      %v2404 = vpop.permute.xlu0 %2403
      %2405 = vrot.lane.b32.xlu0 %v2095, 12
      %v2406 = vpop.permute.xlu0 %2405
      %2407 = vrot.lane.b32.xlu0 %v2096, 12
      %v2408 = vpop.permute.xlu0 %2407
      %2409 = vrot.lane.b32.xlu0 %v2097, 12
      %v2410 = vpop.permute.xlu0 %2409
      %2411 = vrot.lane.b32.xlu0 %v2098, 12
      %v2412 = vpop.permute.xlu0 %2411
      %2413 = vrot.lane.b32.xlu0 %v2099, 12
      %v2414 = vpop.permute.xlu0 %2413
      %2415 = vrot.lane.b32.xlu0 %v2100, 12
      %v2416 = vpop.permute.xlu0 %2415
      %2417 = vrot.lane.b32.xlu0 %v2101, 12
      %v2418 = vpop.permute.xlu0 %2417
      %2419 = vrot.lane.b32.xlu0 %v2102, 12
      %v2420 = vpop.permute.xlu0 %2419
      %2421 = vrot.lane.b32.xlu0 %v2103, 12
      %v2422 = vpop.permute.xlu0 %2421
      %2423 = vrot.lane.b32.xlu0 %v2104, 12
      %v2424 = vpop.permute.xlu0 %2423
      %2425 = vrot.lane.b32.xlu0 %v2105, 12
      %v2426 = vpop.permute.xlu0 %2425
      %2427 = vrot.lane.b32.xlu0 %v2106, 12
      %v2428 = vpop.permute.xlu0 %2427
      %2429 = vrot.lane.b32.xlu0 %v2107, 12
      %v2430 = vpop.permute.xlu0 %2429
      %2431 = vrot.lane.b32.xlu0 %v2108, 12
      %v2432 = vpop.permute.xlu0 %2431
      %2433 = vrot.lane.b32.xlu0 %v2157, 12
      %v2434 = vpop.permute.xlu0 %2433
      %2435 = vrot.lane.b32.xlu0 %v2158, 12
      %v2436 = vpop.permute.xlu0 %2435
      %2437 = vrot.lane.b32.xlu0 %v2159, 12
      %v2438 = vpop.permute.xlu0 %2437
      %2466 = vrot.lane.b32.xlu0 %v2112, 16
      %v2467 = vpop.permute.xlu0 %2466
      %2468 = vrot.lane.b32.xlu0 %v2113, 16
      %v2469 = vpop.permute.xlu0 %2468
      %2470 = vrot.lane.b32.xlu0 %v2114, 16
      %v2471 = vpop.permute.xlu0 %2470
      %2472 = vrot.lane.b32.xlu0 %v2115, 16
      %v2473 = vpop.permute.xlu0 %2472
      %2474 = vrot.lane.b32.xlu0 %v2116, 16
      %v2475 = vpop.permute.xlu0 %2474
      %2476 = vrot.lane.b32.xlu0 %v2117, 16
      %v2477 = vpop.permute.xlu0 %2476
      %2478 = vrot.lane.b32.xlu0 %v2118, 16
      %v2479 = vpop.permute.xlu0 %2478
      %2480 = vrot.lane.b32.xlu0 %v2119, 16
      %v2481 = vpop.permute.xlu0 %2480
      %2482 = vrot.lane.b32.xlu0 %v2120, 16
      %v2483 = vpop.permute.xlu0 %2482
      %2484 = vrot.lane.b32.xlu0 %v2121, 16
      %v2485 = vpop.permute.xlu0 %2484
      %2486 = vrot.lane.b32.xlu0 %v2122, 16
      %v2487 = vpop.permute.xlu0 %2486
      %2488 = vrot.lane.b32.xlu0 %v2123, 16
      %v2489 = vpop.permute.xlu0 %2488
      %2490 = vrot.lane.b32.xlu0 %v2124, 16
      %v2491 = vpop.permute.xlu0 %2490
      %2492 = vrot.lane.b32.xlu0 %v2125, 16
      %v2493 = vpop.permute.xlu0 %2492
      %2494 = vrot.lane.b32.xlu0 %v2126, 16
      %v2495 = vpop.permute.xlu0 %2494
      %2496 = vrot.lane.b32.xlu0 %v2127, 16
      %v2497 = vpop.permute.xlu0 %2496
      %2498 = vrot.lane.b32.xlu0 %v2128, 16
      %v2499 = vpop.permute.xlu0 %2498
      %2500 = vrot.lane.b32.xlu0 %v2129, 16
      %v2501 = vpop.permute.xlu0 %2500
      %2502 = vrot.lane.b32.xlu0 %v2130, 16
      %v2503 = vpop.permute.xlu0 %2502
      %2504 = vrot.lane.b32.xlu0 %v2131, 16
      %v2505 = vpop.permute.xlu0 %2504
      %2506 = vrot.lane.b32.xlu0 %v2132, 16
      %v2507 = vpop.permute.xlu0 %2506
      %2508 = vrot.lane.b32.xlu0 %v2160, 16
      %v2509 = vpop.permute.xlu0 %2508
      %2510 = vrot.lane.b32.xlu0 %v2161, 16
      %v2511 = vpop.permute.xlu0 %2510
      %2512 = vrot.lane.b32.xlu0 %v2162, 16
      %v2513 = vpop.permute.xlu0 %2512
      %2541 = vrot.lane.b32.xlu0 %v2136, 20
      %v2542 = vpop.permute.xlu0 %2541
      %2543 = vrot.lane.b32.xlu0 %v2137, 20
      %v2544 = vpop.permute.xlu0 %2543
      %2545 = vrot.lane.b32.xlu0 %v2138, 20
      %v2546 = vpop.permute.xlu0 %2545
      %2547 = vrot.lane.b32.xlu0 %v2139, 20
      %v2548 = vpop.permute.xlu0 %2547
      %2549 = vrot.lane.b32.xlu0 %v2140, 20
      %v2550 = vpop.permute.xlu0 %2549
      %2551 = vrot.lane.b32.xlu0 %v2141, 20
      %v2552 = vpop.permute.xlu0 %2551
      %2553 = vrot.lane.b32.xlu0 %v2142, 20
      %v2554 = vpop.permute.xlu0 %2553
      %2555 = vrot.lane.b32.xlu0 %v2143, 20
      %v2556 = vpop.permute.xlu0 %2555
      %2557 = vrot.lane.b32.xlu0 %v2144, 20
      %v2558 = vpop.permute.xlu0 %2557
      %2559 = vrot.lane.b32.xlu0 %v2145, 20
      %v2560 = vpop.permute.xlu0 %2559
      %2561 = vrot.lane.b32.xlu0 %v2146, 20
      %v2562 = vpop.permute.xlu0 %2561
      %2563 = vrot.lane.b32.xlu0 %v2147, 20
      %v2564 = vpop.permute.xlu0 %2563
      %2565 = vrot.lane.b32.xlu0 %v2148, 20
      %v2566 = vpop.permute.xlu0 %2565
      %2567 = vrot.lane.b32.xlu0 %v2149, 20
      %v2568 = vpop.permute.xlu0 %2567
      %2569 = vrot.lane.b32.xlu0 %v2150, 20
      %v2570 = vpop.permute.xlu0 %2569
      %2571 = vrot.lane.b32.xlu0 %v2151, 20
      %v2572 = vpop.permute.xlu0 %2571
      %2573 = vrot.lane.b32.xlu0 %v2152, 20
      %v2574 = vpop.permute.xlu0 %2573
      %2575 = vrot.lane.b32.xlu0 %v2153, 20
      %v2576 = vpop.permute.xlu0 %2575
      %2577 = vrot.lane.b32.xlu0 %v2154, 20
      %v2578 = vpop.permute.xlu0 %2577
      %2579 = vrot.lane.b32.xlu0 %v2155, 20
      %v2580 = vpop.permute.xlu0 %2579
      %2581 = vrot.lane.b32.xlu0 %v2156, 20
      %v2582 = vpop.permute.xlu0 %2581
      %2583 = vrot.lane.b32.xlu0 %v2163, 20
      %v2584 = vpop.permute.xlu0 %2583
      %2585 = vrot.lane.b32.xlu0 %v2164, 20
      %v2586 = vpop.permute.xlu0 %2585
      %2587 = vrot.lane.b32.xlu0 %v2165, 20
      %v2588 = vpop.permute.xlu0 %2587
      %2616 = vrot.lane.b32.xlu0 %v2091, 24
      %v2617 = vpop.permute.xlu0 %2616
      %2618 = vrot.lane.b32.xlu0 %v2092, 24
      %v2619 = vpop.permute.xlu0 %2618
      %2620 = vrot.lane.b32.xlu0 %v2093, 24
      %v2621 = vpop.permute.xlu0 %2620
      %2622 = vrot.lane.b32.xlu0 %v2094, 24
      %v2623 = vpop.permute.xlu0 %2622
      %2624 = vrot.lane.b32.xlu0 %v2095, 24
      %v2625 = vpop.permute.xlu0 %2624
      %2626 = vrot.lane.b32.xlu0 %v2096, 24
      %v2627 = vpop.permute.xlu0 %2626
      %2628 = vrot.lane.b32.xlu0 %v2097, 24
      %v2629 = vpop.permute.xlu0 %2628
      %2630 = vrot.lane.b32.xlu0 %v2098, 24
      %v2631 = vpop.permute.xlu0 %2630
      %2632 = vrot.lane.b32.xlu0 %v2099, 24
      %v2633 = vpop.permute.xlu0 %2632
      %2634 = vrot.lane.b32.xlu0 %v2100, 24
      %v2635 = vpop.permute.xlu0 %2634
      %2636 = vrot.lane.b32.xlu0 %v2101, 24
      %v2637 = vpop.permute.xlu0 %2636
      %2638 = vrot.lane.b32.xlu0 %v2102, 24
      %v2639 = vpop.permute.xlu0 %2638
      %2640 = vrot.lane.b32.xlu0 %v2103, 24
      %v2641 = vpop.permute.xlu0 %2640
      %2642 = vrot.lane.b32.xlu0 %v2104, 24
      %v2643 = vpop.permute.xlu0 %2642
      %2644 = vrot.lane.b32.xlu0 %v2105, 24
      %v2645 = vpop.permute.xlu0 %2644
      %2646 = vrot.lane.b32.xlu0 %v2106, 24
      %v2647 = vpop.permute.xlu0 %2646
      %2648 = vrot.lane.b32.xlu0 %v2107, 24
      %v2649 = vpop.permute.xlu0 %2648
      %2650 = vrot.lane.b32.xlu0 %v2108, 24
      %v2651 = vpop.permute.xlu0 %2650
      %2652 = vrot.lane.b32.xlu0 %v2157, 24
      %v2653 = vpop.permute.xlu0 %2652
      %2654 = vrot.lane.b32.xlu0 %v2158, 24
      %v2655 = vpop.permute.xlu0 %2654
      %2656 = vrot.lane.b32.xlu0 %v2159, 24
      %v2657 = vpop.permute.xlu0 %2656
      %2658 = vrot.lane.b32.xlu0 %v2166, 24
      %v2659 = vpop.permute.xlu0 %2658
      %2660 = vrot.lane.b32.xlu0 %v2167, 24
      %v2661 = vpop.permute.xlu0 %2660
      %2662 = vrot.lane.b32.xlu0 %v2168, 24
      %v2663 = vpop.permute.xlu0 %2662
      %2691 = vrot.lane.b32.xlu0 %v2115, 28
      %v2692 = vpop.permute.xlu0 %2691
      %2693 = vrot.lane.b32.xlu0 %v2116, 28
      %v2694 = vpop.permute.xlu0 %2693
      %2695 = vrot.lane.b32.xlu0 %v2117, 28
      %v2696 = vpop.permute.xlu0 %2695
      %2697 = vrot.lane.b32.xlu0 %v2118, 28
      %v2698 = vpop.permute.xlu0 %2697
      %2699 = vrot.lane.b32.xlu0 %v2119, 28
      %v2700 = vpop.permute.xlu0 %2699
      %2701 = vrot.lane.b32.xlu0 %v2120, 28
      %v2702 = vpop.permute.xlu0 %2701
      %2703 = vrot.lane.b32.xlu0 %v2121, 28
      %v2704 = vpop.permute.xlu0 %2703
      %2705 = vrot.lane.b32.xlu0 %v2122, 28
      %v2706 = vpop.permute.xlu0 %2705
      %2707 = vrot.lane.b32.xlu0 %v2123, 28
      %v2708 = vpop.permute.xlu0 %2707
      %2709 = vrot.lane.b32.xlu0 %v2124, 28
      %v2710 = vpop.permute.xlu0 %2709
      %2711 = vrot.lane.b32.xlu0 %v2125, 28
      %v2712 = vpop.permute.xlu0 %2711
      %2713 = vrot.lane.b32.xlu0 %v2126, 28
      %v2714 = vpop.permute.xlu0 %2713
      %2715 = vrot.lane.b32.xlu0 %v2127, 28
      %v2716 = vpop.permute.xlu0 %2715
      %2717 = vrot.lane.b32.xlu0 %v2128, 28
      %v2718 = vpop.permute.xlu0 %2717
      %2719 = vrot.lane.b32.xlu0 %v2129, 28
      %v2720 = vpop.permute.xlu0 %2719
      %2721 = vrot.lane.b32.xlu0 %v2130, 28
      %v2722 = vpop.permute.xlu0 %2721
      %2723 = vrot.lane.b32.xlu0 %v2131, 28
      %v2724 = vpop.permute.xlu0 %2723
      %2725 = vrot.lane.b32.xlu0 %v2132, 28
      %v2726 = vpop.permute.xlu0 %2725
      %2727 = vrot.lane.b32.xlu0 %v2160, 28
      %v2728 = vpop.permute.xlu0 %2727
      %2729 = vrot.lane.b32.xlu0 %v2161, 28
      %v2730 = vpop.permute.xlu0 %2729
      %2731 = vrot.lane.b32.xlu0 %v2162, 28
      %v2732 = vpop.permute.xlu0 %2731
      %2733 = vrot.lane.b32.xlu0 %v2169, 28
      %v2734 = vpop.permute.xlu0 %2733
      %2735 = vrot.lane.b32.xlu0 %v2170, 28
      %v2736 = vpop.permute.xlu0 %2735
      %2737 = vrot.lane.b32.xlu0 %v2171, 28
      %v2738 = vpop.permute.xlu0 %2737
      %2766 = vrot.lane.b32.xlu0 %v2139, 32
      %v2767 = vpop.permute.xlu0 %2766
      %2768 = vrot.lane.b32.xlu0 %v2140, 32
      %v2769 = vpop.permute.xlu0 %2768
      %2770 = vrot.lane.b32.xlu0 %v2141, 32
      %v2771 = vpop.permute.xlu0 %2770
      %2772 = vrot.lane.b32.xlu0 %v2142, 32
      %v2773 = vpop.permute.xlu0 %2772
      %2774 = vrot.lane.b32.xlu0 %v2143, 32
      %v2775 = vpop.permute.xlu0 %2774
      %2776 = vrot.lane.b32.xlu0 %v2144, 32
      %v2777 = vpop.permute.xlu0 %2776
      %2778 = vrot.lane.b32.xlu0 %v2145, 32
      %v2779 = vpop.permute.xlu0 %2778
      %2780 = vrot.lane.b32.xlu0 %v2146, 32
      %v2781 = vpop.permute.xlu0 %2780
      %2782 = vrot.lane.b32.xlu0 %v2147, 32
      %v2783 = vpop.permute.xlu0 %2782
      %2784 = vrot.lane.b32.xlu0 %v2148, 32
      %v2785 = vpop.permute.xlu0 %2784
      %2786 = vrot.lane.b32.xlu0 %v2149, 32
      %v2787 = vpop.permute.xlu0 %2786
      %2788 = vrot.lane.b32.xlu0 %v2150, 32
      %v2789 = vpop.permute.xlu0 %2788
      %2790 = vrot.lane.b32.xlu0 %v2151, 32
      %v2791 = vpop.permute.xlu0 %2790
      %2792 = vrot.lane.b32.xlu0 %v2152, 32
      %v2793 = vpop.permute.xlu0 %2792
      %2794 = vrot.lane.b32.xlu0 %v2153, 32
      %v2795 = vpop.permute.xlu0 %2794
      %2796 = vrot.lane.b32.xlu0 %v2154, 32
      %v2797 = vpop.permute.xlu0 %2796
      %2798 = vrot.lane.b32.xlu0 %v2155, 32
      %v2799 = vpop.permute.xlu0 %2798
      %2800 = vrot.lane.b32.xlu0 %v2156, 32
      %v2801 = vpop.permute.xlu0 %2800
      %2802 = vrot.lane.b32.xlu0 %v2163, 32
      %v2803 = vpop.permute.xlu0 %2802
      %2804 = vrot.lane.b32.xlu0 %v2164, 32
      %v2805 = vpop.permute.xlu0 %2804
      %2806 = vrot.lane.b32.xlu0 %v2165, 32
      %v2807 = vpop.permute.xlu0 %2806
      %2808 = vrot.lane.b32.xlu0 %v2172, 32
      %v2809 = vpop.permute.xlu0 %2808
      %2810 = vrot.lane.b32.xlu0 %v2173, 32
      %v2811 = vpop.permute.xlu0 %2810
      %2812 = vrot.lane.b32.xlu0 %v2174, 32
      %v2813 = vpop.permute.xlu0 %2812
      %v2838 = vsel %vm290, %v2085, %v2200
      %v2839 = vsel %vm290, %v2086, %v2202
      %v2840 = vsel %vm290, %v2087, %v2204
      %v2841 = vsel %vm290, %v2088, %v2206
      %v2842 = vsel %vm290, %v2089, %v2208
      %v2843 = vsel %vm290, %v2090, %v2210
      %v2844 = vsel %vm290, %v2091, %v2212
      %v2845 = vsel %vm290, %v2092, %v2214
      %v2846 = vsel %vm290, %v2093, %v2216
      %v2847 = vsel %vm290, %v2094, %v2218
      %v2848 = vsel %vm290, %v2095, %v2220
      %v2849 = vsel %vm290, %v2096, %v2222
      %v2850 = vsel %vm290, %v2097, %v2224
      %v2851 = vsel %vm290, %v2098, %v2226
      %v2852 = vsel %vm290, %v2099, %v2228
      %v2853 = vsel %vm290, %v2100, %v2230
      %v2854 = vsel %vm290, %v2101, %v2232
      %v2855 = vsel %vm290, %v2102, %v2234
      %v2856 = vsel %vm290, %v2103, %v2236
      %v2857 = vsel %vm290, %v2104, %v2238
      %v2858 = vsel %vm290, %v2105, %v2240
      %v2859 = vsel %vm290, %v2106, %v2242
      %v2860 = vsel %vm290, %v2107, %v2244
      %v2861 = vsel %vm290, %v2108, %v2246
      %v2862 = vsel %vm1258, %v2838, %v2296
      %v2863 = vsel %vm1258, %v2839, %v2298
      %v2864 = vsel %vm1258, %v2840, %v2300
      %v2865 = vsel %vm1258, %v2841, %v2302
      %v2866 = vsel %vm1258, %v2842, %v2304
      %v2867 = vsel %vm1258, %v2843, %v2306
      %v2868 = vsel %vm1258, %v2844, %v2308
      %v2869 = vsel %vm1258, %v2845, %v2310
      %v2870 = vsel %vm1258, %v2846, %v2312
      %v2871 = vsel %vm1258, %v2847, %v2314
      %v2872 = vsel %vm1258, %v2848, %v2316
      %v2873 = vsel %vm1258, %v2849, %v2318
      %v2874 = vsel %vm1258, %v2850, %v2320
      %v2875 = vsel %vm1258, %v2851, %v2322
      %v2876 = vsel %vm1258, %v2852, %v2324
      %v2877 = vsel %vm1258, %v2853, %v2326
      %v2878 = vsel %vm1258, %v2854, %v2328
      %v2879 = vsel %vm1258, %v2855, %v2330
      %v2880 = vsel %vm1258, %v2856, %v2332
      %v2881 = vsel %vm1258, %v2857, %v2334
      %v2882 = vsel %vm1258, %v2858, %v2336
      %v2883 = vsel %vm1258, %v2859, %v2338
      %v2884 = vsel %vm1258, %v2860, %v2340
      %v2885 = vsel %vm1258, %v2861, %v2342
      %v2886 = vsel %vm1289, %v2862, %v2392
      %v2887 = vsel %vm1289, %v2863, %v2394
      %v2888 = vsel %vm1289, %v2864, %v2396
      %v2889 = vsel %vm1289, %v2865, %v2398
      %v2890 = vsel %vm1289, %v2866, %v2400
      %v2891 = vsel %vm1289, %v2867, %v2402
      %v2892 = vsel %vm1289, %v2868, %v2404
      %v2893 = vsel %vm1289, %v2869, %v2406
      %v2894 = vsel %vm1289, %v2870, %v2408
      %v2895 = vsel %vm1289, %v2871, %v2410
      %v2896 = vsel %vm1289, %v2872, %v2412
      %v2897 = vsel %vm1289, %v2873, %v2414
      %v2898 = vsel %vm1289, %v2874, %v2416
      %v2899 = vsel %vm1289, %v2875, %v2418
      %v2900 = vsel %vm1289, %v2876, %v2420
      %v2901 = vsel %vm1289, %v2877, %v2422
      %v2902 = vsel %vm1289, %v2878, %v2424
      %v2903 = vsel %vm1289, %v2879, %v2426
      %v2904 = vsel %vm1289, %v2880, %v2428
      %v2905 = vsel %vm1289, %v2881, %v2430
      %v2906 = vsel %vm1289, %v2882, %v2432
      %v2907 = vsel %vm1289, %v2883, %v2434
      %v2908 = vsel %vm1289, %v2884, %v2436
      %v2909 = vsel %vm1289, %v2885, %v2438
      %v2910 = vsel %vm1320, %v2886, %v2467
      %v2911 = vsel %vm1320, %v2887, %v2469
      %v2912 = vsel %vm1320, %v2888, %v2471
      %v2913 = vsel %vm1320, %v2889, %v2473
      %v2914 = vsel %vm1320, %v2890, %v2475
      %v2915 = vsel %vm1320, %v2891, %v2477
      %v2916 = vsel %vm1320, %v2892, %v2479
      %v2917 = vsel %vm1320, %v2893, %v2481
      %v2918 = vsel %vm1320, %v2894, %v2483
      %v2919 = vsel %vm1320, %v2895, %v2485
      %v2920 = vsel %vm1320, %v2896, %v2487
      %v2921 = vsel %vm1320, %v2897, %v2489
      %v2922 = vsel %vm1320, %v2898, %v2491
      %v2923 = vsel %vm1320, %v2899, %v2493
      %v2924 = vsel %vm1320, %v2900, %v2495
      %v2925 = vsel %vm1320, %v2901, %v2497
      %v2926 = vsel %vm1320, %v2902, %v2499
      %v2927 = vsel %vm1320, %v2903, %v2501
      %v2928 = vsel %vm1320, %v2904, %v2503
      %v2929 = vsel %vm1320, %v2905, %v2505
      %v2930 = vsel %vm1320, %v2906, %v2507
      %v2931 = vsel %vm1320, %v2907, %v2509
      %v2932 = vsel %vm1320, %v2908, %v2511
      %v2933 = vsel %vm1320, %v2909, %v2513
      %v2934 = vsel %vm1351, %v2910, %v2542
      %v2935 = vsel %vm1351, %v2911, %v2544
      %v2936 = vsel %vm1351, %v2912, %v2546
      %v2937 = vsel %vm1351, %v2913, %v2548
      %v2938 = vsel %vm1351, %v2914, %v2550
      %v2939 = vsel %vm1351, %v2915, %v2552
      %v2940 = vsel %vm1351, %v2916, %v2554
      %v2941 = vsel %vm1351, %v2917, %v2556
      %v2942 = vsel %vm1351, %v2918, %v2558
      %v2943 = vsel %vm1351, %v2919, %v2560
      %v2944 = vsel %vm1351, %v2920, %v2562
      %v2945 = vsel %vm1351, %v2921, %v2564
      %v2946 = vsel %vm1351, %v2922, %v2566
      %v2947 = vsel %vm1351, %v2923, %v2568
      %v2948 = vsel %vm1351, %v2924, %v2570
      %v2949 = vsel %vm1351, %v2925, %v2572
      %v2950 = vsel %vm1351, %v2926, %v2574
      %v2951 = vsel %vm1351, %v2927, %v2576
      %v2952 = vsel %vm1351, %v2928, %v2578
      %v2953 = vsel %vm1351, %v2929, %v2580
      %v2954 = vsel %vm1351, %v2930, %v2582
      %v2955 = vsel %vm1351, %v2931, %v2584
      %v2956 = vsel %vm1351, %v2932, %v2586
      %v2957 = vsel %vm1351, %v2933, %v2588
      %v2958 = vsel %vm1382, %v2934, %v2617
      %v2959 = vsel %vm1382, %v2935, %v2619
      %v2960 = vsel %vm1382, %v2936, %v2621
      %v2961 = vsel %vm1382, %v2937, %v2623
      %v2962 = vsel %vm1382, %v2938, %v2625
      %v2963 = vsel %vm1382, %v2939, %v2627
      %v2964 = vsel %vm1382, %v2940, %v2629
      %v2965 = vsel %vm1382, %v2941, %v2631
      %v2966 = vsel %vm1382, %v2942, %v2633
      %v2967 = vsel %vm1382, %v2943, %v2635
      %v2968 = vsel %vm1382, %v2944, %v2637
      %v2969 = vsel %vm1382, %v2945, %v2639
      %v2970 = vsel %vm1382, %v2946, %v2641
      %v2971 = vsel %vm1382, %v2947, %v2643
      %v2972 = vsel %vm1382, %v2948, %v2645
      %v2973 = vsel %vm1382, %v2949, %v2647
      %v2974 = vsel %vm1382, %v2950, %v2649
      %v2975 = vsel %vm1382, %v2951, %v2651
      %v2976 = vsel %vm1382, %v2952, %v2653
      %v2977 = vsel %vm1382, %v2953, %v2655
      %v2978 = vsel %vm1382, %v2954, %v2657
      %v2979 = vsel %vm1382, %v2955, %v2659
      %v2980 = vsel %vm1382, %v2956, %v2661
      %v2981 = vsel %vm1382, %v2957, %v2663
      %v2982 = vsel %vm1413, %v2958, %v2692
      %v2983 = vsel %vm1413, %v2959, %v2694
      %v2984 = vsel %vm1413, %v2960, %v2696
      %v2985 = vsel %vm1413, %v2961, %v2698
      %v2986 = vsel %vm1413, %v2962, %v2700
      %v2987 = vsel %vm1413, %v2963, %v2702
      %v2988 = vsel %vm1413, %v2964, %v2704
      %v2989 = vsel %vm1413, %v2965, %v2706
      %v2990 = vsel %vm1413, %v2966, %v2708
      %v2991 = vsel %vm1413, %v2967, %v2710
      %v2992 = vsel %vm1413, %v2968, %v2712
      %v2993 = vsel %vm1413, %v2969, %v2714
      %v2994 = vsel %vm1413, %v2970, %v2716
      %v2995 = vsel %vm1413, %v2971, %v2718
      %v2996 = vsel %vm1413, %v2972, %v2720
      %v2997 = vsel %vm1413, %v2973, %v2722
      %v2998 = vsel %vm1413, %v2974, %v2724
      %v2999 = vsel %vm1413, %v2975, %v2726
      %v3000 = vsel %vm1413, %v2976, %v2728
      %v3001 = vsel %vm1413, %v2977, %v2730
      %v3002 = vsel %vm1413, %v2978, %v2732
      %v3003 = vsel %vm1413, %v2979, %v2734
      %v3004 = vsel %vm1413, %v2980, %v2736
      %v3005 = vsel %vm1413, %v2981, %v2738
      %v3006 = vsel %vm1444, %v2982, %v2767
      %v3007 = vsel %vm1444, %v2983, %v2769
      %v3008 = vsel %vm1444, %v2984, %v2771
      %v3009 = vsel %vm1444, %v2985, %v2773
      %v3010 = vsel %vm1444, %v2986, %v2775
      %v3011 = vsel %vm1444, %v2987, %v2777
      %v3012 = vsel %vm1444, %v2988, %v2779
      %v3013 = vsel %vm1444, %v2989, %v2781
      %v3014 = vsel %vm1444, %v2990, %v2783
      %v3015 = vsel %vm1444, %v2991, %v2785
      %v3016 = vsel %vm1444, %v2992, %v2787
      %v3017 = vsel %vm1444, %v2993, %v2789
      %v3018 = vsel %vm1444, %v2994, %v2791
      %v3019 = vsel %vm1444, %v2995, %v2793
      %v3020 = vsel %vm1444, %v2996, %v2795
      %v3021 = vsel %vm1444, %v2997, %v2797
      %v3022 = vsel %vm1444, %v2998, %v2799
      %v3023 = vsel %vm1444, %v2999, %v2801
      %v3024 = vsel %vm1444, %v3000, %v2803
      %v3025 = vsel %vm1444, %v3001, %v2805
      %v3026 = vsel %vm1444, %v3002, %v2807
      %v3027 = vsel %vm1444, %v3003, %v2809
      %v3028 = vsel %vm1444, %v3004, %v2811
      %v3029 = vsel %vm1444, %v3005, %v2813
      %v3030 = vld [vmem:[%s3] sm:$0xff]
      %v3031 = vld [vmem:[%s3 + $0x8] sm:$0xff]
      %v3032 = vld [vmem:[%s3 + $0x10] sm:$0xff]
      %v3033 = vld [vmem:[%s3 + $0x18] sm:$0xff]
      %v3034 = vld [vmem:[%s3 + $0x20] sm:$0xf]
      %v3035 = vld [vmem:[%s4] sm:$0x1]
      %v3037 = vlaneseq
      %v3038 = vshrl.u32 %v3037, 7
      %v3039 = vsub.s32 0, %v3038
      %v3040 = vrot.slane %v3035, %v3039
      %v3043 = vsel %vm1487, %v3006, 0
      %v3046 = vsel %vm1487, %v3007, 0
      %v3049 = vsel %vm1487, %v3008, 0
      %v3052 = vsel %vm1487, %v3009, 0
      %v3055 = vsel %vm1487, %v3010, 0
      %v3058 = vsel %vm1487, %v3011, 0
      %v3061 = vsel %vm1487, %v3012, 0
      %v3064 = vsel %vm1487, %v3013, 0
      %v3067 = vsel %vm1487, %v3014, 0
      %v3070 = vsel %vm1487, %v3015, 0
      %v3073 = vsel %vm1487, %v3016, 0
      %v3076 = vsel %vm1487, %v3017, 0
      %v3079 = vsel %vm1487, %v3018, 0
      %v3082 = vsel %vm1487, %v3019, 0
      %v3085 = vsel %vm1487, %v3020, 0
      %v3088 = vsel %vm1487, %v3021, 0
      %v3091 = vsel %vm1487, %v3022, 0
      %v3094 = vsel %vm1487, %v3023, 0
      %v3097 = vsel %vm1487, %v3024, 0
      %v3100 = vsel %vm1487, %v3025, 0
      %v3103 = vsel %vm1487, %v3026, 0
      %v3106 = vsel %vm1487, %v3027, 0
      %v3109 = vsel %vm1487, %v3028, 0
      %v3112 = vsel %vm1487, %v3029, 0
      %v3115 = vsel %vm1578, %v3034, 0
      %3117 = vmatprep.subr.mxu0 0.0
      %3118 = vmatpush1.msra.mxu0 0.0
      %3119 = vmatprep.subr.mxu0 0.0
      %3120 = vmatpush1.msra.mxu0 0.0
      %3121 = vmatprep.subr.mxu0 0.0
      %3122 = vmatpush1.msra.mxu0 0.0
      %3123 = vmatprep.subr.mxu0 0.0
      %3124 = vmatpush1.msra.mxu0 0.0
      %3125 = vmatprep.subr.mxu0 0.0
      %3126 = vmatpush1.msra.mxu0 0.0
      %3127 = vmatprep.subr.mxu0 0.0
      %3128 = vmatpush1.msra.mxu0 0.0
      %3129 = vmatprep.subr.mxu0 0.0
      %3130 = vmatpush1.msra.mxu0 0.0
      %3131 = vmatprep.subr.mxu0 0.0
      %3132 = vmatpush1.msra.mxu0 0.0
      %3133 = vmatprep.subr.mxu0 0.0
      %3134 = vmatpush1.msra.mxu0 0.0
      %3135 = vmatprep.subr.mxu0 0.0
      %3136 = vmatpush1.msra.mxu0 0.0
      %3137 = vmatprep.subr.mxu0 0.0
      %3138 = vmatpush1.msra.mxu0 0.0
      %3139 = vmatprep.subr.mxu0 0.0
      %3140 = vmatpush1.msra.mxu0 %v3115
      %3141 = vmatprep.subr.mxu0 0.0
      %3142 = vmatpush1.msra.mxu0 %v3033
      %3143 = vmatprep.subr.mxu0 0.0
      %3144 = vmatpush1.msra.mxu0 %v3032
      %3145 = vmatprep.subr.mxu0 0.0
      %3146 = vmatpush1.msra.mxu0 %v3031
      %3147 = vmatprep.subr.mxu0 0.0
      %3148 = vmatpush1.msra.mxu0 %v3030
      %3149 = vmatprep.subr.mxu0 0.0
      %3150 = vmatpush2.msra.mxu0 0.0
      %3151 = vmatprep.subr.mxu0 0.0
      %3152 = vmatpush2.msra.mxu0 0.0
      %3153 = vmatprep.subr.mxu0 0.0
      %3154 = vmatpush2.msra.mxu0 0.0
      %3155 = vmatprep.subr.mxu0 0.0
      %3156 = vmatpush2.msra.mxu0 0.0
      %3157 = vmatprep.subr.mxu0 0.0
      %3158 = vmatpush2.msra.mxu0 0.0
      %3159 = vmatprep.subr.mxu0 0.0
      %3160 = vmatpush2.msra.mxu0 0.0
      %3161 = vmatprep.subr.mxu0 0.0
      %3162 = vmatpush2.msra.mxu0 0.0
      %3163 = vmatprep.subr.mxu0 0.0
      %3164 = vmatpush2.msra.mxu0 0.0
      %3165 = vmatprep.subr.mxu0 0.0
      %3166 = vmatpush2.msra.mxu0 0.0
      %3167 = vmatprep.subr.mxu0 0.0
      %3168 = vmatpush2.msra.mxu0 0.0
      %3169 = vmatprep.subr.mxu0 0.0
      %3170 = vmatpush2.msra.mxu0 0.0
      %3171 = vmatprep.subr.mxu0 0.0
      %3172 = vmatpush2.msra.mxu0 0.0
      %3173 = vmatprep.subr.mxu0 0.0
      %3174 = vmatpush2.msra.mxu0 0.0
      %3175 = vmatprep.subr.mxu0 0.0
      %3176 = vmatpush2.msra.mxu0 0.0
      %3177 = vmatprep.subr.mxu0 0.0
      %3178 = vmatpush2.msra.mxu0 0.0
      %3179 = vmatprep.subr.mxu0 0.0
      %3180 = vmatpush2.msra.mxu0 0.0
      %3181 = vmatprep.mubr.f32.mxu0 0.0
      %3182 = vmatmul.mubr.f32.gmra.mxu0 %v3043
      %v3183 = vpop.f32.mrf.mxu0
      %v3184 = vadd.f32 %v3040, %v3183
      %v3185 = vpop.f32.mrf.mxu0
      %3186 = vmatprep.mubr.f32.mxu0 0.0
      %3187 = vmatmul.mubr.f32.gmra.mxu0 %v3046
      %v3188 = vpop.f32.mrf.mxu0
      %v3189 = vadd.f32 %v3040, %v3188
      %v3190 = vpop.f32.mrf.mxu0
      %3191 = vmatprep.mubr.f32.mxu0 0.0
      %3192 = vmatmul.mubr.f32.gmra.mxu0 %v3049
      %v3193 = vpop.f32.mrf.mxu0
      %v3194 = vadd.f32 %v3040, %v3193
      %v3195 = vpop.f32.mrf.mxu0
      %3196 = vmatprep.mubr.f32.mxu0 0.0
      %3197 = vmatmul.mubr.f32.gmra.mxu0 %v3052
      %v3198 = vpop.f32.mrf.mxu0
      %v3199 = vadd.f32 %v3040, %v3198
      %v3200 = vpop.f32.mrf.mxu0
      %3201 = vmatprep.mubr.f32.mxu0 0.0
      %3202 = vmatmul.mubr.f32.gmra.mxu0 %v3055
      %v3203 = vpop.f32.mrf.mxu0
      %v3204 = vadd.f32 %v3040, %v3203
      %v3205 = vpop.f32.mrf.mxu0
      %3206 = vmatprep.mubr.f32.mxu0 0.0
      %3207 = vmatmul.mubr.f32.gmra.mxu0 %v3058
      %v3208 = vpop.f32.mrf.mxu0
      %v3209 = vadd.f32 %v3040, %v3208
      %v3210 = vpop.f32.mrf.mxu0
      %3211 = vmatprep.mubr.f32.mxu0 0.0
      %3212 = vmatmul.mubr.f32.gmra.mxu0 %v3061
      %v3213 = vpop.f32.mrf.mxu0
      %v3214 = vadd.f32 %v3040, %v3213
      %v3215 = vpop.f32.mrf.mxu0
      %3216 = vmatprep.mubr.f32.mxu0 0.0
      %3217 = vmatmul.mubr.f32.gmra.mxu0 %v3064
      %v3218 = vpop.f32.mrf.mxu0
      %v3219 = vadd.f32 %v3040, %v3218
      %v3220 = vpop.f32.mrf.mxu0
      %3221 = vmatprep.mubr.f32.mxu0 0.0
      %3222 = vmatmul.mubr.f32.gmra.mxu0 %v3067
      %v3223 = vpop.f32.mrf.mxu0
      %v3224 = vadd.f32 %v3040, %v3223
      %v3225 = vpop.f32.mrf.mxu0
      %3226 = vmatprep.mubr.f32.mxu0 0.0
      %3227 = vmatmul.mubr.f32.gmra.mxu0 %v3070
      %v3228 = vpop.f32.mrf.mxu0
      %v3229 = vadd.f32 %v3040, %v3228
      %v3230 = vpop.f32.mrf.mxu0
      %3231 = vmatprep.mubr.f32.mxu0 0.0
      %3232 = vmatmul.mubr.f32.gmra.mxu0 %v3073
      %v3233 = vpop.f32.mrf.mxu0
      %v3234 = vadd.f32 %v3040, %v3233
      %v3235 = vpop.f32.mrf.mxu0
      %3236 = vmatprep.mubr.f32.mxu0 0.0
      %3237 = vmatmul.mubr.f32.gmra.mxu0 %v3076
      %v3238 = vpop.f32.mrf.mxu0
      %v3239 = vadd.f32 %v3040, %v3238
      %v3240 = vpop.f32.mrf.mxu0
      %3241 = vmatprep.mubr.f32.mxu0 0.0
      %3242 = vmatmul.mubr.f32.gmra.mxu0 %v3079
      %v3243 = vpop.f32.mrf.mxu0
      %v3244 = vadd.f32 %v3040, %v3243
      %v3245 = vpop.f32.mrf.mxu0
      %3246 = vmatprep.mubr.f32.mxu0 0.0
      %3247 = vmatmul.mubr.f32.gmra.mxu0 %v3082
      %v3248 = vpop.f32.mrf.mxu0
      %v3249 = vadd.f32 %v3040, %v3248
      %v3250 = vpop.f32.mrf.mxu0
      %3251 = vmatprep.mubr.f32.mxu0 0.0
      %3252 = vmatmul.mubr.f32.gmra.mxu0 %v3085
      %v3253 = vpop.f32.mrf.mxu0
      %v3254 = vadd.f32 %v3040, %v3253
      %v3255 = vpop.f32.mrf.mxu0
      %3256 = vmatprep.mubr.f32.mxu0 0.0
      %3257 = vmatmul.mubr.f32.gmra.mxu0 %v3088
      %v3258 = vpop.f32.mrf.mxu0
      %v3259 = vadd.f32 %v3040, %v3258
      %v3260 = vpop.f32.mrf.mxu0
      %3261 = vmatprep.mubr.f32.mxu0 0.0
      %3262 = vmatmul.mubr.f32.gmra.mxu0 %v3091
      %v3263 = vpop.f32.mrf.mxu0
      %v3264 = vadd.f32 %v3040, %v3263
      %v3265 = vpop.f32.mrf.mxu0
      %3266 = vmatprep.mubr.f32.mxu0 0.0
      %3267 = vmatmul.mubr.f32.gmra.mxu0 %v3094
      %v3268 = vpop.f32.mrf.mxu0
      %v3269 = vadd.f32 %v3040, %v3268
      %v3270 = vpop.f32.mrf.mxu0
      %3271 = vmatprep.mubr.f32.mxu0 0.0
      %3272 = vmatmul.mubr.f32.gmra.mxu0 %v3097
      %v3273 = vpop.f32.mrf.mxu0
      %v3274 = vadd.f32 %v3040, %v3273
      %v3275 = vpop.f32.mrf.mxu0
      %3276 = vmatprep.mubr.f32.mxu0 0.0
      %3277 = vmatmul.mubr.f32.gmra.mxu0 %v3100
      %v3278 = vpop.f32.mrf.mxu0
      %v3279 = vadd.f32 %v3040, %v3278
      %v3280 = vpop.f32.mrf.mxu0
      %3281 = vmatprep.mubr.f32.mxu0 0.0
      %3282 = vmatmul.mubr.f32.gmra.mxu0 %v3103
      %v3283 = vpop.f32.mrf.mxu0
      %v3284 = vadd.f32 %v3040, %v3283
      %v3285 = vpop.f32.mrf.mxu0
      %3286 = vmatprep.mubr.f32.mxu0 0.0
      %3287 = vmatmul.mubr.f32.gmra.mxu0 %v3106
      %v3288 = vpop.f32.mrf.mxu0
      %v3289 = vadd.f32 %v3040, %v3288
      %v3290 = vpop.f32.mrf.mxu0
      %3291 = vmatprep.mubr.f32.mxu0 0.0
      %3292 = vmatmul.mubr.f32.gmra.mxu0 %v3109
      %v3293 = vpop.f32.mrf.mxu0
      %v3294 = vadd.f32 %v3040, %v3293
      %v3295 = vpop.f32.mrf.mxu0
      %3296 = vmatprep.mubr.f32.mxu0 0.0
      %3297 = vmatmul.mubr.f32.gmra.mxu0 %v3112
      %v3298 = vpop.f32.mrf.mxu0
      %v3299 = vadd.f32 %v3040, %v3298
      %v3300 = vpop.f32.mrf.mxu0
      %3301 = vdwg.mxu0
      %v3302 = vld [vmem:[%s278 + $0x31] sm:$0xff]
      %v3303 = vld [vmem:[%s278 + $0x39] sm:$0xff]
      %v3304 = vld [vmem:[%s278 + $0x41] sm:$0xff]
      %v3305 = vld [vmem:[%s278 + $0x49] sm:$0xff]
      %v3306 = vld [vmem:[%s278 + $0x51] sm:$0xff]
      %v3307 = vld [vmem:[%s278 + $0x59] sm:$0xff]
      %v3308 = vld [vmem:[%s278 + $0x61] sm:$0xff]
      %v3309 = vld [vmem:[%s278 + $0x69] sm:$0xff]
      %v3310 = vld [vmem:[%s278 + $0x71] sm:$0xff]
      %v3311 = vld [vmem:[%s278 + $0x79] sm:$0xff]
      %v3312 = vld [vmem:[%s278 + $0x81] sm:$0xff]
      %v3313 = vld [vmem:[%s278 + $0x89] sm:$0xff]
      %v3314 = vld [vmem:[%s278 + $0x91] sm:$0xff]
      %v3315 = vld [vmem:[%s278 + $0x99] sm:$0xff]
      %v3316 = vld [vmem:[%s278 + $0xa1] sm:$0xff]
      %v3317 = vld [vmem:[%s278 + $0xa9] sm:$0xff]
      %v3318 = vld [vmem:[%s278 + $0xb1] sm:$0xff]
      %v3319 = vld [vmem:[%s278 + $0xb9] sm:$0xff]
      %v3320 = vld [vmem:[%s278 + $0xc1] sm:$0xff]
      %v3321 = vld [vmem:[%s278 + $0xc9] sm:$0xff]
      %v3322 = vld [vmem:[%s278 + $0xd1] sm:$0xff]
      %v3323 = vld [vmem:[%s278 + $0xd9] sm:$0xff]
      %v3324 = vld [vmem:[%s278 + $0xe1] sm:$0xff]
      %v3325 = vld [vmem:[%s278 + $0xe9] sm:$0xff]
      %v3326 = vadd.f32 %v3302, %v3184
      %v3327 = vadd.f32 %v3303, %v3189
      %v3328 = vadd.f32 %v3304, %v3194
      %v3329 = vadd.f32 %v3305, %v3199
      %v3330 = vadd.f32 %v3306, %v3204
      %v3331 = vadd.f32 %v3307, %v3209
      %v3332 = vadd.f32 %v3308, %v3214
      %v3333 = vadd.f32 %v3309, %v3219
      %v3334 = vadd.f32 %v3310, %v3224
      %v3335 = vadd.f32 %v3311, %v3229
      %v3336 = vadd.f32 %v3312, %v3234
      %v3337 = vadd.f32 %v3313, %v3239
      %v3338 = vadd.f32 %v3314, %v3244
      %v3339 = vadd.f32 %v3315, %v3249
      %v3340 = vadd.f32 %v3316, %v3254
      %v3341 = vadd.f32 %v3317, %v3259
      %v3342 = vadd.f32 %v3318, %v3264
      %v3343 = vadd.f32 %v3319, %v3269
      %v3344 = vadd.f32 %v3320, %v3274
      %v3345 = vadd.f32 %v3321, %v3279
      %v3346 = vadd.f32 %v3322, %v3284
      %v3347 = vadd.f32 %v3323, %v3289
      %v3348 = vadd.f32 %v3324, %v3294
      %v3349 = vadd.f32 %v3325, %v3299
      %3350 = vst.msk [vmem:[%s287] sm:$0xff] %vm290, %v3326
      %3351 = vst.msk [vmem:[%s287 + $0x8] sm:$0xff] %vm290, %v3327
      %3352 = vst.msk [vmem:[%s287 + $0x10] sm:$0xff] %vm290, %v3328
      %3353 = vst.msk [vmem:[%s287 + $0x18] sm:$0xff] %vm290, %v3329
      %3354 = vst.msk [vmem:[%s287 + $0x20] sm:$0xff] %vm290, %v3330
      %3355 = vst.msk [vmem:[%s287 + $0x28] sm:$0xff] %vm290, %v3331
      %3356 = vst.msk [vmem:[%s287 + $0x30] sm:$0xff] %vm290, %v3332
      %3357 = vst.msk [vmem:[%s287 + $0x38] sm:$0xff] %vm290, %v3333
      %3358 = vst.msk [vmem:[%s287 + $0x40] sm:$0xff] %vm290, %v3334
      %3359 = vst.msk [vmem:[%s287 + $0x48] sm:$0xff] %vm290, %v3335
      %3360 = vst.msk [vmem:[%s287 + $0x50] sm:$0xff] %vm290, %v3336
      %3361 = vst.msk [vmem:[%s287 + $0x58] sm:$0xff] %vm290, %v3337
      %3362 = vst.msk [vmem:[%s287 + $0x60] sm:$0xff] %vm290, %v3338
      %3363 = vst.msk [vmem:[%s287 + $0x68] sm:$0xff] %vm290, %v3339
      %3364 = vst.msk [vmem:[%s287 + $0x70] sm:$0xff] %vm290, %v3340
      %3365 = vst.msk [vmem:[%s287 + $0x78] sm:$0xff] %vm290, %v3341
      %3366 = vst.msk [vmem:[%s287 + $0x80] sm:$0xff] %vm290, %v3342
      %3367 = vst.msk [vmem:[%s287 + $0x88] sm:$0xff] %vm290, %v3343
      %3368 = vst.msk [vmem:[%s287 + $0x90] sm:$0xff] %vm290, %v3344
      %3369 = vst.msk [vmem:[%s287 + $0x98] sm:$0xff] %vm290, %v3345
      %3370 = vst.msk [vmem:[%s287 + $0xa0] sm:$0xff] %vm290, %v3346
      %3371 = vst.msk [vmem:[%s287 + $0xa8] sm:$0xff] %vm290, %v3347
      %3372 = vst.msk [vmem:[%s287 + $0xb0] sm:$0xff] %vm290, %v3348
      %3373 = vst.msk [vmem:[%s287 + $0xb8] sm:$0xff] %vm290, %v3349
      %p3374 = scmp.lt.s32.totalorder %s21, 1
      %s3375 = scalar_select %p3374, %s21, 1
      %p3376 = scmp.lt.s32.totalorder %s22, 1
      %s3377 = scalar_select %p3376, %s22, 1
      %s3378 = smul.addr %s3377, 24
      %s3379 = smul.addr %s3375, 48
      %s3380 = sadd.s32 %s3378, %s3379
      %s3381 = smul.addr %s3380, 8
      %s3382 = scalar_lea.vmem %s6, %s3381
      // Predicated region
      $region53: #{tpu_custom_call.1} parent=43 // pred_check
        %p3383 = pneg %p182
      $region54: #{tpu_custom_call.1} parent=43 // pred_check_branch
        %3385 = sbr.rel (%p3383) target = $region56
      $region55: #{tpu_custom_call.1} parent=43 // pred_region
        _
      $region56: #{tpu_custom_call.1} parent=43 // pred_fallthru
        _
    $region44: #{tpu_custom_call.1} parent=5 // pred_fallthru
      _
    %p3386 = scmp.le.s32.totalorder 2, %s12
    // Predicated region
    $region57: #{tpu_custom_call.1} parent=5 // pred_check
      %p3387 = pneg %p3386
    $region58: #{tpu_custom_call.1} parent=5 // pred_check_branch
      %3389 = sbr.rel (%p3387) target = $region60
    $region59: #{tpu_custom_call.1} parent=5 // pred_region
      %s3390 = ssub.s32 %s12, 2
      // Predicated region
      $region61: #{tpu_custom_call.1} parent=59 // pred_check
        %p3391 = pneg %p188
      $region62: #{tpu_custom_call.1} parent=59 // pred_check_branch
        %3393 = sbr.rel (%p3391) target = $region64
      $region63: #{tpu_custom_call.1} parent=59 // pred_region
        %p3394 = scmp.lt.s32.totalorder %s23, 1
        %s3395 = scalar_select %p3394, %s23, 1
        %p3396 = scmp.lt.s32.totalorder %s24, 1
        %s3397 = scalar_select %p3396, %s24, 1
        %s3398 = smul.addr %s3397, 24
        %s3399 = smul.addr %s3395, 48
        %s3400 = sadd.s32 %s3398, %s3399
        %s3401 = smul.addr %s3400, 8
        %s3402 = scalar_lea.vmem %s6, %s3401
      $region64: #{tpu_custom_call.1} parent=59 // pred_fallthru
        _
    $region60: #{tpu_custom_call.1} parent=5 // pred_fallthru
      _
  $region6: #{tpu_custom_call.1} parent=0 // loop_footer
    %s16 = sadd.s32 1, %s12
  $region7: #{tpu_custom_call.1} parent=0 // loop_footer_branch
    %11 = sbr.rel target = $region3
  $region8: #{tpu_custom_call.1} parent=0 // loop_exit
    _

</llo_original>
